<compile_context>
chip_gen: v6e
topology: v6e:2x2x1
jax: 0.10.0
libtpu: 0.0.40
codegen_flags: <defaults>
</compile_context>

<pallas_src>
import math
import jax
import jax.numpy as jnp
from jax import lax
from jax.experimental import pallas as pl

# ---------------- config (mirrors __C) ----------------
B = 2            # batch
S = 16           # sequence length
H = 32           # HIDDEN_SIZE
FF = 64          # FF_SIZE
NH = 4           # MULTI_HEAD
DH = H // NH     # head dim
BS = B * S       # folded batch*seq rows
EPS = 1e-6
NEG_PAD = -1e9   # padding-key bias (same magnitude as torch masked_fill)
NEG_XB = -2e9    # cross-batch key bias (kills attention across folded batches)
INV_H = 1.0 / H
INV_HM1 = 1.0 / (H - 1)
# DROPOUT_R treated as 0 (eval mode) -> dropout layers are identity.

# ---------------- const param-slab layout (rows, lanes) ----------------
# All sublane starts are multiples of 8; single f32 slab -> single input DMA.
#   rows  0..31 , lanes  0..95  : wqkv  (head-major [q|k|v] per head, q scaled)
#   rows  0..31 , lanes 96..127 : wm    (merge weight)
#   row   32    , lanes  0..95  : bqkv
#   rows  32..37, lanes 96..127 : vec6 = [bm, g1, be1, b2, g2, be2]
#   rows 40..71 , lanes  0..63  : w1
#   row   72    , lanes  0..63  : b1
#   rows 80..143, lanes  0..31  : w2
P_ROWS = 144


def _layernorm(x, g, b):
    # torch LayerNorm in the reference module: unbiased std (N-1), eps added
    # to std; divides replaced by constant multiplies + approx EUP reciprocal.
    mean = jnp.sum(x, axis=-1, keepdims=True) * INV_H
    d = x - mean
    var = jnp.sum(d * d, axis=-1, keepdims=True) * INV_HM1
    inv = pl.reciprocal(jnp.sqrt(var) + EPS, approx=True)
    return g * d * inv + b


def encoder_kernel(y_ref, bias_ref, p_ref, out_ref):
    y = y_ref[...]                                                   # (BS, H)
    bias = bias_ref[...]                                             # (BS, BS)

    # ---- carve the packed parameter slab with static views ----
    wqkv = p_ref[0:32, 0:96]                                         # (H, 3H)
    wm = p_ref[0:32, 96:128]                                         # (H, H)
    bqkv = p_ref[32:33, 0:96]                                        # (1, 3H)
    vecs = p_ref[32:38, 96:128]                                      # (6, H)
    w1 = p_ref[40:72, 0:64]                                          # (H, FF)
    b1 = p_ref[72:73, 0:64]                                          # (1, FF)
    w2 = p_ref[80:144, 0:32]                                         # (FF, H)

    # ---- fused, head-major Q|K|V projection (1/sqrt(d_k) folded into Q) ----
    qkv = jnp.dot(y, wqkv, preferred_element_type=jnp.float32) + bqkv  # (BS, 3H)

    # ---- per-head attention, merge-projection fused into the accumulation ----
    merged = None
    for h in range(NH):                      # NH = 4, statically unrolled
        base = h * 3 * DH                    # head-major: [q_h|k_h|v_h] contiguous
        q_h = qkv[:, base:base + DH]                                 # (BS, DH)
        k_h = qkv[:, base + DH:base + 2 * DH]                        # (BS, DH)
        v_h = qkv[:, base + 2 * DH:base + 3 * DH]                    # (BS, DH)
        # q_h @ k_h^T with the transpose folded into the MXU operand feed
        s = lax.dot_general(q_h, k_h, (((1,), (1,)), ((), ())),
                            preferred_element_type=jnp.float32) + bias
        # keep max-subtraction: all-masked rows degrade to a uniform softmax
        s = s - jnp.max(s, axis=-1, keepdims=True)
        p = jnp.exp(s)
        p = p * pl.reciprocal(jnp.sum(p, axis=-1, keepdims=True), approx=True)
        o_h = jnp.dot(p, v_h, preferred_element_type=jnp.float32)    # (BS, DH)
        # equivalent to concat(heads) @ Wm, without the lane-concatenate;
        # wm row-slices are sublane-aligned (multiples of 8) -> vreg selects.
        c = jnp.dot(o_h, wm[h * DH:(h + 1) * DH, :],
                    preferred_element_type=jnp.float32)              # (BS, H)
        merged = c if merged is None else merged + c

    bm, g1, be1 = vecs[0:1, :], vecs[1:2, :], vecs[2:3, :]
    b2, g2, be2 = vecs[3:4, :], vecs[4:5, :], vecs[5:6, :]

    # ---- residual + LayerNorm1 ----
    x1 = _layernorm(y + merged + bm, g1, be1)

    # ---- FFN (Linear -> ReLU -> Linear) + residual + LayerNorm2 ----
    h1 = jnp.dot(x1, w1, preferred_element_type=jnp.float32) + b1
    h1 = jnp.maximum(h1, 0.0)
    ff = jnp.dot(h1, w2, preferred_element_type=jnp.float32) + b2
    out_ref[...] = _layernorm(x1 + ff, g2, be2)


@jax.jit
def encoder_forward(y, y_mask, param_slab):
    """y: (B,S,H) f32; y_mask: (B,1,S) f32 (1.0 = masked key); param_slab = pack_params(raw)."""
    # additive attention bias for the folded-batch layout, built by XLA outside
    # the kernel (the cross-batch part is a constant and gets folded).
    pad_bias = jnp.where(y_mask.reshape(1, BS) > 0.5, NEG_PAD, 0.0)     # (1, BS)
    blk = jnp.arange(BS, dtype=jnp.int32) // S
    xb_bias = jnp.where(blk[:, None] == blk[None, :], 0.0, NEG_XB)      # (BS, BS)
    bias = xb_bias + pad_bias                                           # (BS, BS)

    out = pl.pallas_call(
        encoder_kernel,
        out_shape=jax.ShapeDtypeStruct((BS, H), jnp.float32),
        # no grid: a single invocation; whole working set (~80 KB) lives in VMEM
    )(y.reshape(BS, H), bias, param_slab)
    return out.reshape(B, S, H)


# ---------------- parameter handling ----------------
def init_params(key):
    """Raw parameters, laid out like torch Linear (stored here as (in, out))."""
    ks = jax.random.split(key, 8)

    def lin(k, fan_in, fan_out):
        bound = 1.0 / math.sqrt(fan_in)
        kw, kb = jax.random.split(k)
        w = jax.random.uniform(kw, (fan_in, fan_out), jnp.float32, -bound, bound)
        b = jax.random.uniform(kb, (1, fan_out), jnp.float32, -bound, bound)
        return w, b

    wq, bq = lin(ks[0], H, H)
    wk, bk = lin(ks[1], H, H)
    wv, bv = lin(ks[2], H, H)
    wm, bm = lin(ks[3], H, H)
    g1, be1 = jnp.ones((1, H), jnp.float32), jnp.zeros((1, H), jnp.float32)
    w1, b1 = lin(ks[4], H, FF)
    w2, b2 = lin(ks[5], FF, H)
    g2, be2 = jnp.ones((1, H), jnp.float32), jnp.zeros((1, H), jnp.float32)
    return (wq, bq, wk, bk, wv, bv, wm, bm, g1, be1, w1, b1, w2, b2, g2, be2)


def pack_params(raw):
    """One-time host-side fusion: head-major QKV concat with 1/sqrt(d_k) folded
    into the Q columns, and every weight/bias packed into a single (144, 128)
    f32 slab (one input DMA, carved with static views in the kernel)."""
    (wq, bq, wk, bk, wv, bv, wm, bm, g1, be1, w1, b1, w2, b2, g2, be2) = raw
    scale = 1.0 / math.sqrt(DH)
    wq, bq = wq * scale, bq * scale

    # head-major: per head h the columns are [q_h | k_h | v_h]
    wqkv = jnp.concatenate(
        [jnp.concatenate([wq[:, h * DH:(h + 1) * DH],
                          wk[:, h * DH:(h + 1) * DH],
                          wv[:, h * DH:(h + 1) * DH]], axis=1)
         for h in range(NH)], axis=1)                             # (H, 3H)
    bqkv = jnp.concatenate(
        [jnp.concatenate([bq[:, h * DH:(h + 1) * DH],
                          bk[:, h * DH:(h + 1) * DH],
                          bv[:, h * DH:(h + 1) * DH]], axis=1)
         for h in range(NH)], axis=1)                             # (1, 3H)
    vec6 = jnp.concatenate([bm, g1, be1, b2, g2, be2], axis=0)    # (6, H)

    slab = jnp.zeros((P_ROWS, 128), jnp.float32)
    slab = slab.at[0:32, 0:96].set(wqkv)
    slab = slab.at[0:32, 96:128].set(wm)
    slab = slab.at[32:33, 0:96].set(bqkv)
    slab = slab.at[32:38, 96:128].set(vec6)
    slab = slab.at[40:72, 0:64].set(w1)
    slab = slab.at[72:73, 0:64].set(b1)
    slab = slab.at[80:144, 0:32].set(w2)
    return slab


# ---------------- pure-JAX reference (torch semantics) ----------------
def encoder_reference(y, y_mask, raw):
    (wq, bq, wk, bk, wv, bv, wm, bm, g1, be1, w1, b1, w2, b2, g2, be2) = raw

    def ln(x, g, b):
        mean = jnp.mean(x, -1, keepdims=True)
        var = jnp.sum((x - mean) ** 2, -1, keepdims=True) / (x.shape[-1] - 1)
        return g * (x - mean) / (jnp.sqrt(var) + EPS) + b

    def split(x):  # (B,S,H) -> (B,NH,S,DH)
        return x.reshape(B, S, NH, DH).transpose(0, 2, 1, 3)

    q, k, v = split(y @ wq + bq), split(y @ wk + bk), split(y @ wv + bv)
    s = jnp.einsum("bhqd,bhkd->bhqk", q, k) / math.sqrt(DH)
    s = jnp.where(y_mask[:, :, None, :] > 0.5, NEG_PAD, s)   # masked_fill(-1e9)
    p = jax.nn.softmax(s, axis=-1)
    o = jnp.einsum("bhqk,bhkd->bhqd", p, v).transpose(0, 2, 1, 3).reshape(B, S, H)
    x1 = ln(y + (o @ wm + bm), g1, be1)
    ff = jnp.maximum(x1 @ w1 + b1, 0.0) @ w2 + b2
    return ln(x1 + ff, g2, be2)


if __name__ == "__main__":
    key = jax.random.PRNGKey(0)
    k_y, k_m, k_p = jax.random.split(key, 3)

    y = jax.random.normal(k_y, (B, S, H), jnp.float32)
    # boolean padding mask (True = masked key), stored as float32 (1.0 = masked),
    # broadcast over heads and query rows like torch's (B, 1, 1, S) mask.
    mask_bool = jax.random.uniform(k_m, (B, 1, S)) > 0.8
    y_mask = mask_bool.astype(jnp.float32)

    raw = init_params(k_p)
    param_slab = pack_params(raw)   # one-time host-side weight fusion / packing

    out = encoder_forward(y, y_mask, param_slab)
    out = jax.block_until_ready(out)

    ref = encoder_reference(y, y_mask, raw)
    assert out.shape == (B, S, H)
    assert bool(jnp.all(jnp.isfinite(out)))
    assert bool(jnp.allclose(out, ref, rtol=1e-2, atol=1e-2)), \
        float(jnp.max(jnp.abs(out - ref)))
    print("KERNEL_OK")
</pallas_src>

<mosaic_0001>
module attributes {stable_mosaic.version = 11 : i64} {
  func.func @encoder_kernel(%arg0: memref<32x32xf32, #tpu.memory_space<vmem>>, %arg1: memref<32x32xf32, #tpu.memory_space<vmem>>, %arg2: memref<144x128xf32, #tpu.memory_space<vmem>>, %arg3: memref<32x32xf32, #tpu.memory_space<vmem>>) attributes {dimension_semantics = [], scalar_prefetch = 0 : i64, scratch_operands = 0 : i64, tpu.core_type = #tpu.core_type<tc>} {
    %c0 = arith.constant 0 : index
    %c0_0 = arith.constant 0 : index
    %0 = vector.load %arg0[%c0, %c0_0] : memref<32x32xf32, #tpu.memory_space<vmem>>, vector<32x32xf32>
    %c0_1 = arith.constant 0 : index
    %c0_2 = arith.constant 0 : index
    %1 = vector.load %arg1[%c0_1, %c0_2] : memref<32x32xf32, #tpu.memory_space<vmem>>, vector<32x32xf32>
    %2 = vector.shape_cast %1 : vector<32x32xf32> to vector<32x32xf32>
    %c0_3 = arith.constant 0 : index
    %c0_4 = arith.constant 0 : index
    %3 = vector.load %arg2[%c0_3, %c0_4] : memref<144x128xf32, #tpu.memory_space<vmem>>, vector<32x96xf32>
    %c0_5 = arith.constant 0 : index
    %c96 = arith.constant 96 : index
    %4 = vector.load %arg2[%c0_5, %c96] : memref<144x128xf32, #tpu.memory_space<vmem>>, vector<32x32xf32>
    %c32 = arith.constant 32 : index
    %c0_6 = arith.constant 0 : index
    %5 = vector.load %arg2[%c32, %c0_6] : memref<144x128xf32, #tpu.memory_space<vmem>>, vector<1x96xf32>
    %c32_7 = arith.constant 32 : index
    %c96_8 = arith.constant 96 : index
    %6 = vector.load %arg2[%c32_7, %c96_8] : memref<144x128xf32, #tpu.memory_space<vmem>>, vector<6x32xf32>
    %c40 = arith.constant 40 : index
    %c0_9 = arith.constant 0 : index
    %7 = vector.load %arg2[%c40, %c0_9] : memref<144x128xf32, #tpu.memory_space<vmem>>, vector<32x64xf32>
    %c72 = arith.constant 72 : index
    %c0_10 = arith.constant 0 : index
    %8 = vector.load %arg2[%c72, %c0_10] : memref<144x128xf32, #tpu.memory_space<vmem>>, vector<1x64xf32>
    %c80 = arith.constant 80 : index
    %c0_11 = arith.constant 0 : index
    %9 = vector.load %arg2[%c80, %c0_11] : memref<144x128xf32, #tpu.memory_space<vmem>>, vector<64x32xf32>
    %cst = arith.constant dense<0.000000e+00> : vector<32x96xf32>
    %10 = tpu.matmul %0, %3, %cst {dimension_numbers = #tpu.dot_dimension_numbers<[1], [0], [0], [1], [0, 0, 1, 1], [], []>} : vector<32x32xf32>, vector<32x96xf32>, vector<32x96xf32> -> vector<32x96xf32>
    %11 = vector.broadcast %5 : vector<1x96xf32> to vector<32x96xf32>
    %12 = arith.addf %10, %11 : vector<32x96xf32>
    %13 = vector.extract_strided_slice %12 {offsets = [0, 0], sizes = [32, 8], strides = [1, 1]} : vector<32x96xf32> to vector<32x8xf32>
    %14 = vector.extract_strided_slice %12 {offsets = [0, 8], sizes = [32, 8], strides = [1, 1]} : vector<32x96xf32> to vector<32x8xf32>
    %15 = vector.extract_strided_slice %12 {offsets = [0, 16], sizes = [32, 8], strides = [1, 1]} : vector<32x96xf32> to vector<32x8xf32>
    %cst_12 = arith.constant dense<0.000000e+00> : vector<32x32xf32>
    %16 = tpu.matmul %13, %14, %cst_12 {dimension_numbers = #tpu.dot_dimension_numbers<[1], [1], [0], [0], [0, 0, 1, 0], [], []>} : vector<32x8xf32>, vector<32x8xf32>, vector<32x32xf32> -> vector<32x32xf32>
    %17 = arith.addf %16, %2 : vector<32x32xf32>
    %cst_13 = arith.constant dense<0xFF800000> : vector<32xf32>
    %18 = vector.multi_reduction <maximumf>, %17, %cst_13 [1] : vector<32x32xf32> to vector<32xf32>
    %19 = vector.shape_cast %18 : vector<32xf32> to vector<32x1xf32>
    %20 = vector.broadcast %19 : vector<32x1xf32> to vector<32x32xf32>
    %21 = arith.subf %17, %20 : vector<32x32xf32>
    %22 = math.exp %21 : vector<32x32xf32>
    %cst_14 = arith.constant dense<0.000000e+00> : vector<32xf32>
    %23 = vector.multi_reduction <add>, %22, %cst_14 [1] : vector<32x32xf32> to vector<32xf32>
    %24 = vector.shape_cast %23 : vector<32xf32> to vector<32x1xf32>
    %25 = tpu.reciprocal %24 {approx = true} : vector<32x1xf32> -> vector<32x1xf32>
    %26 = vector.broadcast %25 : vector<32x1xf32> to vector<32x32xf32>
    %27 = arith.mulf %22, %26 : vector<32x32xf32>
    %cst_15 = arith.constant dense<0.000000e+00> : vector<32x8xf32>
    %28 = tpu.matmul %27, %15, %cst_15 {dimension_numbers = #tpu.dot_dimension_numbers<[1], [0], [0], [1], [0, 0, 1, 1], [], []>} : vector<32x32xf32>, vector<32x8xf32>, vector<32x8xf32> -> vector<32x8xf32>
    %29 = vector.extract_strided_slice %4 {offsets = [0, 0], sizes = [8, 32], strides = [1, 1]} : vector<32x32xf32> to vector<8x32xf32>
    %cst_16 = arith.constant dense<0.000000e+00> : vector<32x32xf32>
    %30 = tpu.matmul %28, %29, %cst_16 {dimension_numbers = #tpu.dot_dimension_numbers<[1], [0], [0], [1], [0, 0, 1, 1], [], []>} : vector<32x8xf32>, vector<8x32xf32>, vector<32x32xf32> -> vector<32x32xf32>
    %31 = vector.extract_strided_slice %12 {offsets = [0, 24], sizes = [32, 8], strides = [1, 1]} : vector<32x96xf32> to vector<32x8xf32>
    %32 = vector.extract_strided_slice %12 {offsets = [0, 32], sizes = [32, 8], strides = [1, 1]} : vector<32x96xf32> to vector<32x8xf32>
    %33 = vector.extract_strided_slice %12 {offsets = [0, 40], sizes = [32, 8], strides = [1, 1]} : vector<32x96xf32> to vector<32x8xf32>
    %cst_17 = arith.constant dense<0.000000e+00> : vector<32x32xf32>
    %34 = tpu.matmul %31, %32, %cst_17 {dimension_numbers = #tpu.dot_dimension_numbers<[1], [1], [0], [0], [0, 0, 1, 0], [], []>} : vector<32x8xf32>, vector<32x8xf32>, vector<32x32xf32> -> vector<32x32xf32>
    %35 = arith.addf %34, %2 : vector<32x32xf32>
    %cst_18 = arith.constant dense<0xFF800000> : vector<32xf32>
    %36 = vector.multi_reduction <maximumf>, %35, %cst_18 [1] : vector<32x32xf32> to vector<32xf32>
    %37 = vector.shape_cast %36 : vector<32xf32> to vector<32x1xf32>
    %38 = vector.broadcast %37 : vector<32x1xf32> to vector<32x32xf32>
    %39 = arith.subf %35, %38 : vector<32x32xf32>
    %40 = math.exp %39 : vector<32x32xf32>
    %cst_19 = arith.constant dense<0.000000e+00> : vector<32xf32>
    %41 = vector.multi_reduction <add>, %40, %cst_19 [1] : vector<32x32xf32> to vector<32xf32>
    %42 = vector.shape_cast %41 : vector<32xf32> to vector<32x1xf32>
    %43 = tpu.reciprocal %42 {approx = true} : vector<32x1xf32> -> vector<32x1xf32>
    %44 = vector.broadcast %43 : vector<32x1xf32> to vector<32x32xf32>
    %45 = arith.mulf %40, %44 : vector<32x32xf32>
    %cst_20 = arith.constant dense<0.000000e+00> : vector<32x8xf32>
    %46 = tpu.matmul %45, %33, %cst_20 {dimension_numbers = #tpu.dot_dimension_numbers<[1], [0], [0], [1], [0, 0, 1, 1], [], []>} : vector<32x32xf32>, vector<32x8xf32>, vector<32x8xf32> -> vector<32x8xf32>
    %47 = vector.extract_strided_slice %4 {offsets = [8, 0], sizes = [8, 32], strides = [1, 1]} : vector<32x32xf32> to vector<8x32xf32>
    %cst_21 = arith.constant dense<0.000000e+00> : vector<32x32xf32>
    %48 = tpu.matmul %46, %47, %cst_21 {dimension_numbers = #tpu.dot_dimension_numbers<[1], [0], [0], [1], [0, 0, 1, 1], [], []>} : vector<32x8xf32>, vector<8x32xf32>, vector<32x32xf32> -> vector<32x32xf32>
    %49 = arith.addf %30, %48 : vector<32x32xf32>
    %50 = vector.extract_strided_slice %12 {offsets = [0, 48], sizes = [32, 8], strides = [1, 1]} : vector<32x96xf32> to vector<32x8xf32>
    %51 = vector.extract_strided_slice %12 {offsets = [0, 56], sizes = [32, 8], strides = [1, 1]} : vector<32x96xf32> to vector<32x8xf32>
    %52 = vector.extract_strided_slice %12 {offsets = [0, 64], sizes = [32, 8], strides = [1, 1]} : vector<32x96xf32> to vector<32x8xf32>
    %cst_22 = arith.constant dense<0.000000e+00> : vector<32x32xf32>
    %53 = tpu.matmul %50, %51, %cst_22 {dimension_numbers = #tpu.dot_dimension_numbers<[1], [1], [0], [0], [0, 0, 1, 0], [], []>} : vector<32x8xf32>, vector<32x8xf32>, vector<32x32xf32> -> vector<32x32xf32>
    %54 = arith.addf %53, %2 : vector<32x32xf32>
    %cst_23 = arith.constant dense<0xFF800000> : vector<32xf32>
    %55 = vector.multi_reduction <maximumf>, %54, %cst_23 [1] : vector<32x32xf32> to vector<32xf32>
    %56 = vector.shape_cast %55 : vector<32xf32> to vector<32x1xf32>
    %57 = vector.broadcast %56 : vector<32x1xf32> to vector<32x32xf32>
    %58 = arith.subf %54, %57 : vector<32x32xf32>
    %59 = math.exp %58 : vector<32x32xf32>
    %cst_24 = arith.constant dense<0.000000e+00> : vector<32xf32>
    %60 = vector.multi_reduction <add>, %59, %cst_24 [1] : vector<32x32xf32> to vector<32xf32>
    %61 = vector.shape_cast %60 : vector<32xf32> to vector<32x1xf32>
    %62 = tpu.reciprocal %61 {approx = true} : vector<32x1xf32> -> vector<32x1xf32>
    %63 = vector.broadcast %62 : vector<32x1xf32> to vector<32x32xf32>
    %64 = arith.mulf %59, %63 : vector<32x32xf32>
    %cst_25 = arith.constant dense<0.000000e+00> : vector<32x8xf32>
    %65 = tpu.matmul %64, %52, %cst_25 {dimension_numbers = #tpu.dot_dimension_numbers<[1], [0], [0], [1], [0, 0, 1, 1], [], []>} : vector<32x32xf32>, vector<32x8xf32>, vector<32x8xf32> -> vector<32x8xf32>
    %66 = vector.extract_strided_slice %4 {offsets = [16, 0], sizes = [8, 32], strides = [1, 1]} : vector<32x32xf32> to vector<8x32xf32>
    %cst_26 = arith.constant dense<0.000000e+00> : vector<32x32xf32>
    %67 = tpu.matmul %65, %66, %cst_26 {dimension_numbers = #tpu.dot_dimension_numbers<[1], [0], [0], [1], [0, 0, 1, 1], [], []>} : vector<32x8xf32>, vector<8x32xf32>, vector<32x32xf32> -> vector<32x32xf32>
    %68 = arith.addf %49, %67 : vector<32x32xf32>
    %69 = vector.extract_strided_slice %12 {offsets = [0, 72], sizes = [32, 8], strides = [1, 1]} : vector<32x96xf32> to vector<32x8xf32>
    %70 = vector.extract_strided_slice %12 {offsets = [0, 80], sizes = [32, 8], strides = [1, 1]} : vector<32x96xf32> to vector<32x8xf32>
    %71 = vector.extract_strided_slice %12 {offsets = [0, 88], sizes = [32, 8], strides = [1, 1]} : vector<32x96xf32> to vector<32x8xf32>
    %cst_27 = arith.constant dense<0.000000e+00> : vector<32x32xf32>
    %72 = tpu.matmul %69, %70, %cst_27 {dimension_numbers = #tpu.dot_dimension_numbers<[1], [1], [0], [0], [0, 0, 1, 0], [], []>} : vector<32x8xf32>, vector<32x8xf32>, vector<32x32xf32> -> vector<32x32xf32>
    %73 = arith.addf %72, %2 : vector<32x32xf32>
    %cst_28 = arith.constant dense<0xFF800000> : vector<32xf32>
    %74 = vector.multi_reduction <maximumf>, %73, %cst_28 [1] : vector<32x32xf32> to vector<32xf32>
    %75 = vector.shape_cast %74 : vector<32xf32> to vector<32x1xf32>
    %76 = vector.broadcast %75 : vector<32x1xf32> to vector<32x32xf32>
    %77 = arith.subf %73, %76 : vector<32x32xf32>
    %78 = math.exp %77 : vector<32x32xf32>
    %cst_29 = arith.constant dense<0.000000e+00> : vector<32xf32>
    %79 = vector.multi_reduction <add>, %78, %cst_29 [1] : vector<32x32xf32> to vector<32xf32>
    %80 = vector.shape_cast %79 : vector<32xf32> to vector<32x1xf32>
    %81 = tpu.reciprocal %80 {approx = true} : vector<32x1xf32> -> vector<32x1xf32>
    %82 = vector.broadcast %81 : vector<32x1xf32> to vector<32x32xf32>
    %83 = arith.mulf %78, %82 : vector<32x32xf32>
    %cst_30 = arith.constant dense<0.000000e+00> : vector<32x8xf32>
    %84 = tpu.matmul %83, %71, %cst_30 {dimension_numbers = #tpu.dot_dimension_numbers<[1], [0], [0], [1], [0, 0, 1, 1], [], []>} : vector<32x32xf32>, vector<32x8xf32>, vector<32x8xf32> -> vector<32x8xf32>
    %85 = vector.extract_strided_slice %4 {offsets = [24, 0], sizes = [8, 32], strides = [1, 1]} : vector<32x32xf32> to vector<8x32xf32>
    %cst_31 = arith.constant dense<0.000000e+00> : vector<32x32xf32>
    %86 = tpu.matmul %84, %85, %cst_31 {dimension_numbers = #tpu.dot_dimension_numbers<[1], [0], [0], [1], [0, 0, 1, 1], [], []>} : vector<32x8xf32>, vector<8x32xf32>, vector<32x32xf32> -> vector<32x32xf32>
    %87 = arith.addf %68, %86 : vector<32x32xf32>
    %88 = vector.extract_strided_slice %6 {offsets = [0, 0], sizes = [1, 32], strides = [1, 1]} : vector<6x32xf32> to vector<1x32xf32>
    %89 = vector.extract_strided_slice %6 {offsets = [1, 0], sizes = [1, 32], strides = [1, 1]} : vector<6x32xf32> to vector<1x32xf32>
    %90 = vector.extract_strided_slice %6 {offsets = [2, 0], sizes = [1, 32], strides = [1, 1]} : vector<6x32xf32> to vector<1x32xf32>
    %91 = vector.extract_strided_slice %6 {offsets = [3, 0], sizes = [1, 32], strides = [1, 1]} : vector<6x32xf32> to vector<1x32xf32>
    %92 = vector.extract_strided_slice %6 {offsets = [4, 0], sizes = [1, 32], strides = [1, 1]} : vector<6x32xf32> to vector<1x32xf32>
    %93 = vector.extract_strided_slice %6 {offsets = [5, 0], sizes = [1, 32], strides = [1, 1]} : vector<6x32xf32> to vector<1x32xf32>
    %94 = arith.addf %0, %87 : vector<32x32xf32>
    %95 = vector.broadcast %88 : vector<1x32xf32> to vector<32x32xf32>
    %96 = arith.addf %94, %95 : vector<32x32xf32>
    %cst_32 = arith.constant dense<0.000000e+00> : vector<32xf32>
    %97 = vector.multi_reduction <add>, %96, %cst_32 [1] : vector<32x32xf32> to vector<32xf32>
    %98 = vector.shape_cast %97 : vector<32xf32> to vector<32x1xf32>
    %cst_33 = arith.constant 3.125000e-02 : f32
    %99 = vector.broadcast %cst_33 : f32 to vector<32x1xf32>
    %100 = arith.mulf %98, %99 : vector<32x1xf32>
    %101 = vector.broadcast %100 : vector<32x1xf32> to vector<32x32xf32>
    %102 = arith.subf %96, %101 : vector<32x32xf32>
    %103 = arith.mulf %102, %102 : vector<32x32xf32>
    %cst_34 = arith.constant dense<0.000000e+00> : vector<32xf32>
    %104 = vector.multi_reduction <add>, %103, %cst_34 [1] : vector<32x32xf32> to vector<32xf32>
    %105 = vector.shape_cast %104 : vector<32xf32> to vector<32x1xf32>
    %cst_35 = arith.constant 0.0322580636 : f32
    %106 = vector.broadcast %cst_35 : f32 to vector<32x1xf32>
    %107 = arith.mulf %105, %106 : vector<32x1xf32>
    %108 = math.sqrt %107 : vector<32x1xf32>
    %cst_36 = arith.constant 9.99999997E-7 : f32
    %109 = vector.broadcast %cst_36 : f32 to vector<32x1xf32>
    %110 = arith.addf %108, %109 : vector<32x1xf32>
    %111 = tpu.reciprocal %110 {approx = true} : vector<32x1xf32> -> vector<32x1xf32>
    %112 = vector.broadcast %89 : vector<1x32xf32> to vector<32x32xf32>
    %113 = arith.mulf %112, %102 : vector<32x32xf32>
    %114 = vector.broadcast %111 : vector<32x1xf32> to vector<32x32xf32>
    %115 = arith.mulf %113, %114 : vector<32x32xf32>
    %116 = vector.broadcast %90 : vector<1x32xf32> to vector<32x32xf32>
    %117 = arith.addf %115, %116 : vector<32x32xf32>
    %cst_37 = arith.constant dense<0.000000e+00> : vector<32x64xf32>
    %118 = tpu.matmul %117, %7, %cst_37 {dimension_numbers = #tpu.dot_dimension_numbers<[1], [0], [0], [1], [0, 0, 1, 1], [], []>} : vector<32x32xf32>, vector<32x64xf32>, vector<32x64xf32> -> vector<32x64xf32>
    %119 = vector.broadcast %8 : vector<1x64xf32> to vector<32x64xf32>
    %120 = arith.addf %118, %119 : vector<32x64xf32>
    %cst_38 = arith.constant 0.000000e+00 : f32
    %121 = vector.broadcast %cst_38 : f32 to vector<32x64xf32>
    %122 = arith.maximumf %120, %121 : vector<32x64xf32>
    %cst_39 = arith.constant dense<0.000000e+00> : vector<32x32xf32>
    %123 = tpu.matmul %122, %9, %cst_39 {dimension_numbers = #tpu.dot_dimension_numbers<[1], [0], [0], [1], [0, 0, 1, 1], [], []>} : vector<32x64xf32>, vector<64x32xf32>, vector<32x32xf32> -> vector<32x32xf32>
    %124 = vector.broadcast %91 : vector<1x32xf32> to vector<32x32xf32>
    %125 = arith.addf %123, %124 : vector<32x32xf32>
    %126 = arith.addf %117, %125 : vector<32x32xf32>
    %cst_40 = arith.constant dense<0.000000e+00> : vector<32xf32>
    %127 = vector.multi_reduction <add>, %126, %cst_40 [1] : vector<32x32xf32> to vector<32xf32>
    %128 = vector.shape_cast %127 : vector<32xf32> to vector<32x1xf32>
    %cst_41 = arith.constant 3.125000e-02 : f32
    %129 = vector.broadcast %cst_41 : f32 to vector<32x1xf32>
    %130 = arith.mulf %128, %129 : vector<32x1xf32>
    %131 = vector.broadcast %130 : vector<32x1xf32> to vector<32x32xf32>
    %132 = arith.subf %126, %131 : vector<32x32xf32>
    %133 = arith.mulf %132, %132 : vector<32x32xf32>
    %cst_42 = arith.constant dense<0.000000e+00> : vector<32xf32>
    %134 = vector.multi_reduction <add>, %133, %cst_42 [1] : vector<32x32xf32> to vector<32xf32>
    %135 = vector.shape_cast %134 : vector<32xf32> to vector<32x1xf32>
    %cst_43 = arith.constant 0.0322580636 : f32
    %136 = vector.broadcast %cst_43 : f32 to vector<32x1xf32>
    %137 = arith.mulf %135, %136 : vector<32x1xf32>
    %138 = math.sqrt %137 : vector<32x1xf32>
    %cst_44 = arith.constant 9.99999997E-7 : f32
    %139 = vector.broadcast %cst_44 : f32 to vector<32x1xf32>
    %140 = arith.addf %138, %139 : vector<32x1xf32>
    %141 = tpu.reciprocal %140 {approx = true} : vector<32x1xf32> -> vector<32x1xf32>
    %142 = vector.broadcast %92 : vector<1x32xf32> to vector<32x32xf32>
    %143 = arith.mulf %142, %132 : vector<32x32xf32>
    %144 = vector.broadcast %141 : vector<32x1xf32> to vector<32x32xf32>
    %145 = arith.mulf %143, %144 : vector<32x32xf32>
    %146 = vector.broadcast %93 : vector<1x32xf32> to vector<32x32xf32>
    %147 = arith.addf %145, %146 : vector<32x32xf32>
    %c0_45 = arith.constant 0 : index
    %c0_46 = arith.constant 0 : index
    %148 = vector.load %arg3[%c0_45, %c0_46] : memref<32x32xf32, #tpu.memory_space<vmem>>, vector<32x32xf32>
    tpu.vector_store %arg3[%c0_45, %c0_46], %147 {strides = array<i32>} : memref<32x32xf32, #tpu.memory_space<vmem>>, vector<32x32xf32>,
    return
  }
}

</mosaic_0001>

<llo_original>
// kernel: encoder_forward.1
$region0: #{encoder_forward.1}
  #allocation0 [shape = 'u32[]', space=smem, size = 0x4, offset = 0x4, fixed_abs, tag = 'smem constant byte address 0x4 - core index']
  #allocation1 [shape = 'u32[144,128]{1,0:T(1,128)}', space=vmem, size = 0x12000, scoped, tag = 'internal scratch']
  %s0 = inlined_call_operand.vmem [shape: f32[32,32], index: 0, kind: input, shape index: {}]
  %s1 = inlined_call_operand.vmem [shape: f32[32,32], index: 1, kind: input, shape index: {}]
  %s2 = inlined_call_operand.hbm [shape: f32[144,128], index: 2, kind: input, shape index: {}]
  %s3 = inlined_call_operand.hbm [shape: f32[32,32], index: 3, kind: output, shape index: {}]
  %s4 = sld [smem:[#allocation0]]
  $region26: #{encoder_forward.1} parent=0
    _
  %s6 = ssub.s32 1, %s4
  %s7 = scalar_select 0, %s6, %s4
  $region1: #{encoder_forward.1} parent=0
    #allocation2 [shape = 'u8[73728]{0}', space=vmem, size = 0x12000, scoped, tag = 'input window, operand 2, single buffered']
    #allocation3 [shape = 's32[1]{0}', space=sflag, size = 0x4, scoped, tag = 'scoped memory for encoder_forward.1']
    #allocation4 [shape = 's32[1]{0}', space=sflag, size = 0x4, scoped, tag = 'scoped memory for encoder_forward.1']
    #allocation5 [shape = 'u8[16384]{0}', space=vmem, size = 0x4000, scoped, tag = 'output window, operand 0, single buffered']
    %8 = vsyncpa [#allocation3], 0
    %9 = vsyncpa [#allocation4], 0
    // Predicated region
    $region2: #{encoder_forward.1} parent=1 // pred_check
      _
    $region3: #{encoder_forward.1} parent=1 // pred_check_branch
      %11 = sbr.rel (0) target = $region5
    $region4: #{encoder_forward.1} parent=1 // pred_region
      _
    $region5: #{encoder_forward.1} parent=1 // pred_fallthru
      _
    // Predicated region
    $region6: #{encoder_forward.1} parent=1 // pred_check
      _
    $region7: #{encoder_forward.1} parent=1 // pred_check_branch
      %13 = sbr.rel (0) target = $region9
    $region8: #{encoder_forward.1} parent=1 // pred_region
      _
    $region9: #{encoder_forward.1} parent=1 // pred_fallthru
      _
    // Predicated region
    $region10: #{encoder_forward.1} parent=1 // pred_check
      _
    $region11: #{encoder_forward.1} parent=1 // pred_check_branch
      %15 = sbr.rel (0) target = $region13
    $region12: #{encoder_forward.1} parent=1 // pred_region
      %s17 = ssub.s32 2304, 2304
      %18 = vsyncadd [#allocation3], %s17
      %s19 = sshll.u32 [#allocation2], 4
      %s20 = int_to_ptr.vmem [resolvable:$true] %s19
      %25 = dma.hbm_to_vmem [thread:$0]  %s2, 2304, %s20, [#allocation3], 128, 128, 8
    $region13: #{encoder_forward.1} parent=1 // pred_fallthru
      _
    // Predicated region
    $region14: #{encoder_forward.1} parent=1 // pred_check
      _
    $region15: #{encoder_forward.1} parent=1 // pred_check_branch
      %27 = sbr.rel (0) target = $region17
    $region16: #{encoder_forward.1} parent=1 // pred_region
      %28 = dma.done [#allocation3], 2304
    $region17: #{encoder_forward.1} parent=1 // pred_fallthru
      _
    %v29 = vld [vmem:[%s0] sm:$0xff]
    %v30 = vld [vmem:[%s0 + $0x8] sm:$0xff]
    %v31 = vld [vmem:[%s0 + $0x10] sm:$0xff]
    %v32 = vld [vmem:[%s0 + $0x18] sm:$0xff]
    %v33 = vld [vmem:[%s1] sm:$0xff]
    %v34 = vld [vmem:[%s1 + $0x8] sm:$0xff]
    %v35 = vld [vmem:[%s1 + $0x10] sm:$0xff]
    %v36 = vld [vmem:[%s1 + $0x18] sm:$0xff]
    %v37 = vld [vmem:[#allocation2] sm:$0xff]
    %v38 = vld [vmem:[#allocation2 + $0x8] sm:$0xff]
    %v39 = vld [vmem:[#allocation2 + $0x10] sm:$0xff]
    %v40 = vld [vmem:[#allocation2 + $0x18] sm:$0xff]
    %v41 = vld [vmem:[#allocation2 + $0x20] sm:$0x1]
    %v42 = vld [vmem:[#allocation2 + $0x20] sm:$0x3f]
    %v43 = vld [vmem:[#allocation2 + $0x28] sm:$0xff]
    %v44 = vld [vmem:[#allocation2 + $0x30] sm:$0xff]
    %v45 = vld [vmem:[#allocation2 + $0x38] sm:$0xff]
    %v46 = vld [vmem:[#allocation2 + $0x40] sm:$0xff]
    %v47 = vld [vmem:[#allocation2 + $0x48] sm:$0x1]
    %v48 = vld [vmem:[#allocation2 + $0x50] sm:$0xff]
    %v49 = vld [vmem:[#allocation2 + $0x58] sm:$0xff]
    %v50 = vld [vmem:[#allocation2 + $0x60] sm:$0xff]
    %v51 = vld [vmem:[#allocation2 + $0x68] sm:$0xff]
    %v52 = vld [vmem:[#allocation2 + $0x70] sm:$0xff]
    %v53 = vld [vmem:[#allocation2 + $0x78] sm:$0xff]
    %v54 = vld [vmem:[#allocation2 + $0x80] sm:$0xff]
    %v55 = vld [vmem:[#allocation2 + $0x88] sm:$0xff]
    %v56 = vlaneseq
    %v57 = vshrl.u32 %v56, 7
    %v58 = vsub.s32 0, %v57
    %v59 = vrot.slane %v41, %v58
    %vm60 = vcmask 261120
    %v62 = vsel %vm60, %v29, 0
    %v65 = vsel %vm60, %v30, 0
    %v68 = vsel %vm60, %v31, 0
    %v71 = vsel %vm60, %v32, 0
    %73 = vmatprep.subr.mxu0 0.0
    %74 = vmatpush1.msra.mxu0 0.0
    %75 = vmatprep.subr.mxu0 0.0
    %76 = vmatpush1.msra.mxu0 0.0
    %77 = vmatprep.subr.mxu0 0.0
    %78 = vmatpush1.msra.mxu0 0.0
    %79 = vmatprep.subr.mxu0 0.0
    %80 = vmatpush1.msra.mxu0 0.0
    %81 = vmatprep.subr.mxu0 0.0
    %82 = vmatpush1.msra.mxu0 0.0
    %83 = vmatprep.subr.mxu0 0.0
    %84 = vmatpush1.msra.mxu0 0.0
    %85 = vmatprep.subr.mxu0 0.0
    %86 = vmatpush1.msra.mxu0 0.0
    %87 = vmatprep.subr.mxu0 0.0
    %88 = vmatpush1.msra.mxu0 0.0
    %89 = vmatprep.subr.mxu0 0.0
    %90 = vmatpush1.msra.mxu0 0.0
    %91 = vmatprep.subr.mxu0 0.0
    %92 = vmatpush1.msra.mxu0 0.0
    %93 = vmatprep.subr.mxu0 0.0
    %94 = vmatpush1.msra.mxu0 0.0
    %95 = vmatprep.subr.mxu0 0.0
    %96 = vmatpush1.msra.mxu0 0.0
    %97 = vmatprep.subr.mxu0 0.0
    %98 = vmatpush1.msra.mxu0 %v40
    %99 = vmatprep.subr.mxu0 0.0
    %100 = vmatpush1.msra.mxu0 %v39
    %101 = vmatprep.subr.mxu0 0.0
    %102 = vmatpush1.msra.mxu0 %v38
    %103 = vmatprep.subr.mxu0 0.0
    %104 = vmatpush1.msra.mxu0 %v37
    %105 = vmatprep.subr.mxu0 0.0
    %106 = vmatpush2.msra.mxu0 0.0
    %107 = vmatprep.subr.mxu0 0.0
    %108 = vmatpush2.msra.mxu0 0.0
    %109 = vmatprep.subr.mxu0 0.0
    %110 = vmatpush2.msra.mxu0 0.0
    %111 = vmatprep.subr.mxu0 0.0
    %112 = vmatpush2.msra.mxu0 0.0
    %113 = vmatprep.subr.mxu0 0.0
    %114 = vmatpush2.msra.mxu0 0.0
    %115 = vmatprep.subr.mxu0 0.0
    %116 = vmatpush2.msra.mxu0 0.0
    %117 = vmatprep.subr.mxu0 0.0
    %118 = vmatpush2.msra.mxu0 0.0
    %119 = vmatprep.subr.mxu0 0.0
    %120 = vmatpush2.msra.mxu0 0.0
    %121 = vmatprep.subr.mxu0 0.0
    %122 = vmatpush2.msra.mxu0 0.0
    %123 = vmatprep.subr.mxu0 0.0
    %124 = vmatpush2.msra.mxu0 0.0
    %125 = vmatprep.subr.mxu0 0.0
    %126 = vmatpush2.msra.mxu0 0.0
    %127 = vmatprep.subr.mxu0 0.0
    %128 = vmatpush2.msra.mxu0 0.0
    %129 = vmatprep.subr.mxu0 0.0
    %130 = vmatpush2.msra.mxu0 0.0
    %131 = vmatprep.subr.mxu0 0.0
    %132 = vmatpush2.msra.mxu0 0.0
    %133 = vmatprep.subr.mxu0 0.0
    %134 = vmatpush2.msra.mxu0 0.0
    %135 = vmatprep.subr.mxu0 0.0
    %136 = vmatpush2.msra.mxu0 0.0
    %137 = vmatprep.mubr.f32.mxu0 0.0
    %138 = vmatmul.mubr.f32.gmra.mxu0 %v62
    %v139 = vpop.f32.mrf.mxu0
    %v140 = vadd.f32 %v59, %v139
    %v141 = vpop.f32.mrf.mxu0
    %142 = vmatprep.mubr.f32.mxu0 0.0
    %143 = vmatmul.mubr.f32.gmra.mxu0 %v65
    %v144 = vpop.f32.mrf.mxu0
    %v145 = vadd.f32 %v59, %v144
    %v146 = vpop.f32.mrf.mxu0
    %147 = vmatprep.mubr.f32.mxu0 0.0
    %148 = vmatmul.mubr.f32.gmra.mxu0 %v68
    %v149 = vpop.f32.mrf.mxu0
    %v150 = vadd.f32 %v59, %v149
    %v151 = vpop.f32.mrf.mxu0
    %152 = vmatprep.mubr.f32.mxu0 0.0
    %153 = vmatmul.mubr.f32.gmra.mxu0 %v71
    %v154 = vpop.f32.mrf.mxu0
    %v155 = vadd.f32 %v59, %v154
    %v156 = vpop.f32.mrf.mxu0
    %157 = vdwg.mxu0
    %162 = vrot.lane.b32.xlu0 %v140, 120
    %v163 = vpop.permute.xlu0 %162
    %164 = vrot.lane.b32.xlu0 %v145, 120
    %v165 = vpop.permute.xlu0 %164
    %166 = vrot.lane.b32.xlu0 %v150, 120
    %v167 = vpop.permute.xlu0 %166
    %168 = vrot.lane.b32.xlu0 %v155, 120
    %v169 = vpop.permute.xlu0 %168
    %vm170 = vcmask 64512
    %v171 = vsel %vm170, %v140, 0
    %v173 = vsel %vm170, %v145, 0
    %v175 = vsel %vm170, %v150, 0
    %v177 = vsel %vm170, %v155, 0
    %v179 = vsel %vm170, %v163, 0
    %v181 = vsel %vm170, %v165, 0
    %v183 = vsel %vm170, %v167, 0
    %v185 = vsel %vm170, %v169, 0
    %187 = vmatprep.subr.mxu0 0.0
    %188 = vmatpush1.xpose.msra.mxu0 0.0
    %189 = vmatprep.subr.mxu0 0.0
    %190 = vmatpush1.xpose.msra.mxu0 0.0
    %191 = vmatprep.subr.mxu0 0.0
    %192 = vmatpush1.xpose.msra.mxu0 0.0
    %193 = vmatprep.subr.mxu0 0.0
    %194 = vmatpush1.xpose.msra.mxu0 0.0
    %195 = vmatprep.subr.mxu0 0.0
    %196 = vmatpush1.xpose.msra.mxu0 0.0
    %197 = vmatprep.subr.mxu0 0.0
    %198 = vmatpush1.xpose.msra.mxu0 0.0
    %199 = vmatprep.subr.mxu0 0.0
    %200 = vmatpush1.xpose.msra.mxu0 0.0
    %201 = vmatprep.subr.mxu0 0.0
    %202 = vmatpush1.xpose.msra.mxu0 0.0
    %203 = vmatprep.subr.mxu0 0.0
    %204 = vmatpush1.xpose.msra.mxu0 0.0
    %205 = vmatprep.subr.mxu0 0.0
    %206 = vmatpush1.xpose.msra.mxu0 0.0
    %207 = vmatprep.subr.mxu0 0.0
    %208 = vmatpush1.xpose.msra.mxu0 0.0
    %209 = vmatprep.subr.mxu0 0.0
    %210 = vmatpush1.xpose.msra.mxu0 0.0
    %211 = vmatprep.subr.mxu0 0.0
    %212 = vmatpush1.xpose.msra.mxu0 %v185
    %213 = vmatprep.subr.mxu0 0.0
    %214 = vmatpush1.xpose.msra.mxu0 %v183
    %215 = vmatprep.subr.mxu0 0.0
    %216 = vmatpush1.xpose.msra.mxu0 %v181
    %217 = vmatprep.subr.mxu0 0.0
    %218 = vmatpush1.xpose.msra.mxu0 %v179
    %219 = vmatprep.subr.mxu0 0.0
    %220 = vmatpush2.xpose.msra.mxu0 0.0
    %221 = vmatprep.subr.mxu0 0.0
    %222 = vmatpush2.xpose.msra.mxu0 0.0
    %223 = vmatprep.subr.mxu0 0.0
    %224 = vmatpush2.xpose.msra.mxu0 0.0
    %225 = vmatprep.subr.mxu0 0.0
    %226 = vmatpush2.xpose.msra.mxu0 0.0
    %227 = vmatprep.subr.mxu0 0.0
    %228 = vmatpush2.xpose.msra.mxu0 0.0
    %229 = vmatprep.subr.mxu0 0.0
    %230 = vmatpush2.xpose.msra.mxu0 0.0
    %231 = vmatprep.subr.mxu0 0.0
    %232 = vmatpush2.xpose.msra.mxu0 0.0
    %233 = vmatprep.subr.mxu0 0.0
    %234 = vmatpush2.xpose.msra.mxu0 0.0
    %235 = vmatprep.subr.mxu0 0.0
    %236 = vmatpush2.xpose.msra.mxu0 0.0
    %237 = vmatprep.subr.mxu0 0.0
    %238 = vmatpush2.xpose.msra.mxu0 0.0
    %239 = vmatprep.subr.mxu0 0.0
    %240 = vmatpush2.xpose.msra.mxu0 0.0
    %241 = vmatprep.subr.mxu0 0.0
    %242 = vmatpush2.xpose.msra.mxu0 0.0
    %243 = vmatprep.subr.mxu0 0.0
    %244 = vmatpush2.xpose.msra.mxu0 0.0
    %245 = vmatprep.subr.mxu0 0.0
    %246 = vmatpush2.xpose.msra.mxu0 0.0
    %247 = vmatprep.subr.mxu0 0.0
    %248 = vmatpush2.xpose.msra.mxu0 0.0
    %249 = vmatprep.subr.mxu0 0.0
    %250 = vmatpush2.xpose.msra.mxu0 0.0
    %251 = vmatprep.mubr.f32.mxu0 0.0
    %252 = vmatmul.mubr.f32.gmra.mxu0 %v171
    %v253 = vpop.f32.mrf.mxu0
    %v254 = vadd.f32 %v33, %v253
    %v255 = vpop.f32.mrf.mxu0
    %256 = vmatprep.mubr.f32.mxu0 0.0
    %257 = vmatmul.mubr.f32.gmra.mxu0 %v173
    %v258 = vpop.f32.mrf.mxu0
    %v259 = vadd.f32 %v34, %v258
    %v260 = vpop.f32.mrf.mxu0
    %261 = vmatprep.mubr.f32.mxu0 0.0
    %262 = vmatmul.mubr.f32.gmra.mxu0 %v175
    %v263 = vpop.f32.mrf.mxu0
    %v264 = vadd.f32 %v35, %v263
    %v265 = vpop.f32.mrf.mxu0
    %266 = vmatprep.mubr.f32.mxu0 0.0
    %267 = vmatmul.mubr.f32.gmra.mxu0 %v177
    %v268 = vpop.f32.mrf.mxu0
    %v269 = vadd.f32 %v36, %v268
    %v270 = vpop.f32.mrf.mxu0
    %271 = vdwg.mxu0
    %v272 = vsel %vm60, %v254, -inf
    %273 = vmax.xlane.f32.xlu0 %v272
    %v274 = vpop.xlane.xlu0 %273
    %v275 = vsel %vm60, %v259, -inf
    %276 = vmax.xlane.f32.xlu0 %v275
    %v277 = vpop.xlane.xlu0 %276
    %v278 = vsel %vm60, %v264, -inf
    %279 = vmax.xlane.f32.xlu0 %v278
    %v280 = vpop.xlane.xlu0 %279
    %v281 = vsel %vm60, %v269, -inf
    %282 = vmax.xlane.f32.xlu0 %v281
    %v283 = vpop.xlane.xlu0 %282
    %v284 = vsub.f32 %v254, %v274
    %v285 = vsub.f32 %v259, %v277
    %v286 = vsub.f32 %v264, %v280
    %v287 = vsub.f32 %v269, %v283
    %v288 = vmul.f32 %v284, 1.442695
    %v289 = vpow.pop %v288
    %v290 = vmul.f32 %v285, 1.442695
    %v291 = vpow.pop %v290
    %v292 = vmul.f32 %v286, 1.442695
    %v293 = vpow.pop %v292
    %v294 = vmul.f32 %v287, 1.442695
    %v295 = vpow.pop %v294
    %v296 = vsel %vm60, %v289, 0.0
    %297 = vadd.xlane.f32.xlu0 %v296
    %v298 = vpop.xlane.xlu0 %297
    %v299 = vsel %vm60, %v291, 0.0
    %300 = vadd.xlane.f32.xlu0 %v299
    %v301 = vpop.xlane.xlu0 %300
    %v302 = vsel %vm60, %v293, 0.0
    %303 = vadd.xlane.f32.xlu0 %v302
    %v304 = vpop.xlane.xlu0 %303
    %v305 = vsel %vm60, %v295, 0.0
    %306 = vadd.xlane.f32.xlu0 %v305
    %v307 = vpop.xlane.xlu0 %306
    %v308 = vrcp.pop %v298
    %v309 = vrcp.pop %v301
    %v310 = vrcp.pop %v304
    %v311 = vrcp.pop %v307
    %v312 = vmul.f32 %v289, %v308
    %v313 = vmul.f32 %v291, %v309
    %v314 = vmul.f32 %v293, %v310
    %v315 = vmul.f32 %v295, %v311
    %316 = vrot.lane.b32.xlu0 %v140, 112
    %v317 = vpop.permute.xlu0 %316
    %318 = vrot.lane.b32.xlu0 %v145, 112
    %v319 = vpop.permute.xlu0 %318
    %320 = vrot.lane.b32.xlu0 %v150, 112
    %v321 = vpop.permute.xlu0 %320
    %322 = vrot.lane.b32.xlu0 %v155, 112
    %v323 = vpop.permute.xlu0 %322
    %v329 = vsel %vm60, %v312, 0
    %v332 = vsel %vm60, %v313, 0
    %v335 = vsel %vm60, %v314, 0
    %v338 = vsel %vm60, %v315, 0
    %340 = vmatprep.subr.mxu0 0.0
    %341 = vmatpush1.msra.mxu0 0.0
    %342 = vmatprep.subr.mxu0 0.0
    %343 = vmatpush1.msra.mxu0 0.0
    %344 = vmatprep.subr.mxu0 0.0
    %345 = vmatpush1.msra.mxu0 0.0
    %346 = vmatprep.subr.mxu0 0.0
    %347 = vmatpush1.msra.mxu0 0.0
    %348 = vmatprep.subr.mxu0 0.0
    %349 = vmatpush1.msra.mxu0 0.0
    %350 = vmatprep.subr.mxu0 0.0
    %351 = vmatpush1.msra.mxu0 0.0
    %352 = vmatprep.subr.mxu0 0.0
    %353 = vmatpush1.msra.mxu0 0.0
    %354 = vmatprep.subr.mxu0 0.0
    %355 = vmatpush1.msra.mxu0 0.0
    %356 = vmatprep.subr.mxu0 0.0
    %357 = vmatpush1.msra.mxu0 0.0
    %358 = vmatprep.subr.mxu0 0.0
    %359 = vmatpush1.msra.mxu0 0.0
    %360 = vmatprep.subr.mxu0 0.0
    %361 = vmatpush1.msra.mxu0 0.0
    %362 = vmatprep.subr.mxu0 0.0
    %363 = vmatpush1.msra.mxu0 0.0
    %364 = vmatprep.subr.mxu0 0.0
    %365 = vmatpush1.msra.mxu0 %v323
    %366 = vmatprep.subr.mxu0 0.0
    %367 = vmatpush1.msra.mxu0 %v321
    %368 = vmatprep.subr.mxu0 0.0
    %369 = vmatpush1.msra.mxu0 %v319
    %370 = vmatprep.subr.mxu0 0.0
    %371 = vmatpush1.msra.mxu0 %v317
    %372 = vmatprep.subr.mxu0 0.0
    %373 = vmatpush2.msra.mxu0 0.0
    %374 = vmatprep.subr.mxu0 0.0
    %375 = vmatpush2.msra.mxu0 0.0
    %376 = vmatprep.subr.mxu0 0.0
    %377 = vmatpush2.msra.mxu0 0.0
    %378 = vmatprep.subr.mxu0 0.0
    %379 = vmatpush2.msra.mxu0 0.0
    %380 = vmatprep.subr.mxu0 0.0
    %381 = vmatpush2.msra.mxu0 0.0
    %382 = vmatprep.subr.mxu0 0.0
    %383 = vmatpush2.msra.mxu0 0.0
    %384 = vmatprep.subr.mxu0 0.0
    %385 = vmatpush2.msra.mxu0 0.0
    %386 = vmatprep.subr.mxu0 0.0
    %387 = vmatpush2.msra.mxu0 0.0
    %388 = vmatprep.subr.mxu0 0.0
    %389 = vmatpush2.msra.mxu0 0.0
    %390 = vmatprep.subr.mxu0 0.0
    %391 = vmatpush2.msra.mxu0 0.0
    %392 = vmatprep.subr.mxu0 0.0
    %393 = vmatpush2.msra.mxu0 0.0
    %394 = vmatprep.subr.mxu0 0.0
    %395 = vmatpush2.msra.mxu0 0.0
    %396 = vmatprep.subr.mxu0 0.0
    %397 = vmatpush2.msra.mxu0 0.0
    %398 = vmatprep.subr.mxu0 0.0
    %399 = vmatpush2.msra.mxu0 0.0
    %400 = vmatprep.subr.mxu0 0.0
    %401 = vmatpush2.msra.mxu0 0.0
    %402 = vmatprep.subr.mxu0 0.0
    %403 = vmatpush2.msra.mxu0 0.0
    %404 = vmatprep.mubr.f32.mxu0 0.0
    %405 = vmatmul.mubr.f32.gmra.mxu0 %v329
    %v406 = vpop.f32.mrf.mxu0
    %v407 = vadd.f32 0.0, %v406
    %v408 = vpop.f32.mrf.mxu0
    %409 = vmatprep.mubr.f32.mxu0 0.0
    %410 = vmatmul.mubr.f32.gmra.mxu0 %v332
    %v411 = vpop.f32.mrf.mxu0
    %v412 = vadd.f32 0.0, %v411
    %v413 = vpop.f32.mrf.mxu0
    %414 = vmatprep.mubr.f32.mxu0 0.0
    %415 = vmatmul.mubr.f32.gmra.mxu0 %v335
    %v416 = vpop.f32.mrf.mxu0
    %v417 = vadd.f32 0.0, %v416
    %v418 = vpop.f32.mrf.mxu0
    %419 = vmatprep.mubr.f32.mxu0 0.0
    %420 = vmatmul.mubr.f32.gmra.mxu0 %v338
    %v421 = vpop.f32.mrf.mxu0
    %v422 = vadd.f32 0.0, %v421
    %v423 = vpop.f32.mrf.mxu0
    %424 = vdwg.mxu0
    %425 = vrot.lane.b32.xlu0 %v140, 104
    %v426 = vpop.permute.xlu0 %425
    %427 = vrot.lane.b32.xlu0 %v145, 104
    %v428 = vpop.permute.xlu0 %427
    %429 = vrot.lane.b32.xlu0 %v150, 104
    %v430 = vpop.permute.xlu0 %429
    %431 = vrot.lane.b32.xlu0 %v155, 104
    %v432 = vpop.permute.xlu0 %431
    %433 = vrot.lane.b32.xlu0 %v140, 96
    %v434 = vpop.permute.xlu0 %433
    %435 = vrot.lane.b32.xlu0 %v145, 96
    %v436 = vpop.permute.xlu0 %435
    %437 = vrot.lane.b32.xlu0 %v150, 96
    %v438 = vpop.permute.xlu0 %437
    %439 = vrot.lane.b32.xlu0 %v155, 96
    %v440 = vpop.permute.xlu0 %439
    %v441 = vsel %vm170, %v426, 0
    %v443 = vsel %vm170, %v428, 0
    %v445 = vsel %vm170, %v430, 0
    %v447 = vsel %vm170, %v432, 0
    %v449 = vsel %vm170, %v434, 0
    %v451 = vsel %vm170, %v436, 0
    %v453 = vsel %vm170, %v438, 0
    %v455 = vsel %vm170, %v440, 0
    %457 = vmatprep.subr.mxu0 0.0
    %458 = vmatpush1.xpose.msra.mxu0 0.0
    %459 = vmatprep.subr.mxu0 0.0
    %460 = vmatpush1.xpose.msra.mxu0 0.0
    %461 = vmatprep.subr.mxu0 0.0
    %462 = vmatpush1.xpose.msra.mxu0 0.0
    %463 = vmatprep.subr.mxu0 0.0
    %464 = vmatpush1.xpose.msra.mxu0 0.0
    %465 = vmatprep.subr.mxu0 0.0
    %466 = vmatpush1.xpose.msra.mxu0 0.0
    %467 = vmatprep.subr.mxu0 0.0
    %468 = vmatpush1.xpose.msra.mxu0 0.0
    %469 = vmatprep.subr.mxu0 0.0
    %470 = vmatpush1.xpose.msra.mxu0 0.0
    %471 = vmatprep.subr.mxu0 0.0
    %472 = vmatpush1.xpose.msra.mxu0 0.0
    %473 = vmatprep.subr.mxu0 0.0
    %474 = vmatpush1.xpose.msra.mxu0 0.0
    %475 = vmatprep.subr.mxu0 0.0
    %476 = vmatpush1.xpose.msra.mxu0 0.0
    %477 = vmatprep.subr.mxu0 0.0
    %478 = vmatpush1.xpose.msra.mxu0 0.0
    %479 = vmatprep.subr.mxu0 0.0
    %480 = vmatpush1.xpose.msra.mxu0 0.0
    %481 = vmatprep.subr.mxu0 0.0
    %482 = vmatpush1.xpose.msra.mxu0 %v455
    %483 = vmatprep.subr.mxu0 0.0
    %484 = vmatpush1.xpose.msra.mxu0 %v453
    %485 = vmatprep.subr.mxu0 0.0
    %486 = vmatpush1.xpose.msra.mxu0 %v451
    %487 = vmatprep.subr.mxu0 0.0
    %488 = vmatpush1.xpose.msra.mxu0 %v449
    %489 = vmatprep.subr.mxu0 0.0
    %490 = vmatpush2.xpose.msra.mxu0 0.0
    %491 = vmatprep.subr.mxu0 0.0
    %492 = vmatpush2.xpose.msra.mxu0 0.0
    %493 = vmatprep.subr.mxu0 0.0
    %494 = vmatpush2.xpose.msra.mxu0 0.0
    %495 = vmatprep.subr.mxu0 0.0
    %496 = vmatpush2.xpose.msra.mxu0 0.0
    %497 = vmatprep.subr.mxu0 0.0
    %498 = vmatpush2.xpose.msra.mxu0 0.0
    %499 = vmatprep.subr.mxu0 0.0
    %500 = vmatpush2.xpose.msra.mxu0 0.0
    %501 = vmatprep.subr.mxu0 0.0
    %502 = vmatpush2.xpose.msra.mxu0 0.0
    %503 = vmatprep.subr.mxu0 0.0
    %504 = vmatpush2.xpose.msra.mxu0 0.0
    %505 = vmatprep.subr.mxu0 0.0
    %506 = vmatpush2.xpose.msra.mxu0 0.0
    %507 = vmatprep.subr.mxu0 0.0
    %508 = vmatpush2.xpose.msra.mxu0 0.0
    %509 = vmatprep.subr.mxu0 0.0
    %510 = vmatpush2.xpose.msra.mxu0 0.0
    %511 = vmatprep.subr.mxu0 0.0
    %512 = vmatpush2.xpose.msra.mxu0 0.0
    %513 = vmatprep.subr.mxu0 0.0
    %514 = vmatpush2.xpose.msra.mxu0 0.0
    %515 = vmatprep.subr.mxu0 0.0
    %516 = vmatpush2.xpose.msra.mxu0 0.0
    %517 = vmatprep.subr.mxu0 0.0
    %518 = vmatpush2.xpose.msra.mxu0 0.0
    %519 = vmatprep.subr.mxu0 0.0
    %520 = vmatpush2.xpose.msra.mxu0 0.0
    %521 = vmatprep.mubr.f32.mxu0 0.0
    %522 = vmatmul.mubr.f32.gmra.mxu0 %v441
    %v523 = vpop.f32.mrf.mxu0
    %v524 = vadd.f32 %v33, %v523
    %v525 = vpop.f32.mrf.mxu0
    %526 = vmatprep.mubr.f32.mxu0 0.0
    %527 = vmatmul.mubr.f32.gmra.mxu0 %v443
    %v528 = vpop.f32.mrf.mxu0
    %v529 = vadd.f32 %v34, %v528
    %v530 = vpop.f32.mrf.mxu0
    %531 = vmatprep.mubr.f32.mxu0 0.0
    %532 = vmatmul.mubr.f32.gmra.mxu0 %v445
    %v533 = vpop.f32.mrf.mxu0
    %v534 = vadd.f32 %v35, %v533
    %v535 = vpop.f32.mrf.mxu0
    %536 = vmatprep.mubr.f32.mxu0 0.0
    %537 = vmatmul.mubr.f32.gmra.mxu0 %v447
    %v538 = vpop.f32.mrf.mxu0
    %v539 = vadd.f32 %v36, %v538
    %v540 = vpop.f32.mrf.mxu0
    %541 = vdwg.mxu0
    %v542 = vsel %vm60, %v524, -inf
    %543 = vmax.xlane.f32.xlu0 %v542
    %v544 = vpop.xlane.xlu0 %543
    %v545 = vsel %vm60, %v529, -inf
    %546 = vmax.xlane.f32.xlu0 %v545
    %v547 = vpop.xlane.xlu0 %546
    %v548 = vsel %vm60, %v534, -inf
    %549 = vmax.xlane.f32.xlu0 %v548
    %v550 = vpop.xlane.xlu0 %549
    %v551 = vsel %vm60, %v539, -inf
    %552 = vmax.xlane.f32.xlu0 %v551
    %v553 = vpop.xlane.xlu0 %552
    %v554 = vsub.f32 %v524, %v544
    %v555 = vsub.f32 %v529, %v547
    %v556 = vsub.f32 %v534, %v550
    %v557 = vsub.f32 %v539, %v553
    %v558 = vmul.f32 %v554, 1.442695
    %v559 = vpow.pop %v558
    %v560 = vmul.f32 %v555, 1.442695
    %v561 = vpow.pop %v560
    %v562 = vmul.f32 %v556, 1.442695
    %v563 = vpow.pop %v562
    %v564 = vmul.f32 %v557, 1.442695
    %v565 = vpow.pop %v564
    %v566 = vsel %vm60, %v559, 0.0
    %567 = vadd.xlane.f32.xlu0 %v566
    %v568 = vpop.xlane.xlu0 %567
    %v569 = vsel %vm60, %v561, 0.0
    %570 = vadd.xlane.f32.xlu0 %v569
    %v571 = vpop.xlane.xlu0 %570
    %v572 = vsel %vm60, %v563, 0.0
    %573 = vadd.xlane.f32.xlu0 %v572
    %v574 = vpop.xlane.xlu0 %573
    %v575 = vsel %vm60, %v565, 0.0
    %576 = vadd.xlane.f32.xlu0 %v575
    %v577 = vpop.xlane.xlu0 %576
    %v578 = vrcp.pop %v568
    %v579 = vrcp.pop %v571
    %v580 = vrcp.pop %v574
    %v581 = vrcp.pop %v577
    %v582 = vmul.f32 %v559, %v578
    %v583 = vmul.f32 %v561, %v579
    %v584 = vmul.f32 %v563, %v580
    %v585 = vmul.f32 %v565, %v581
    %586 = vrot.lane.b32.xlu0 %v140, 88
    %v587 = vpop.permute.xlu0 %586
    %588 = vrot.lane.b32.xlu0 %v145, 88
    %v589 = vpop.permute.xlu0 %588
    %590 = vrot.lane.b32.xlu0 %v150, 88
    %v591 = vpop.permute.xlu0 %590
    %592 = vrot.lane.b32.xlu0 %v155, 88
    %v593 = vpop.permute.xlu0 %592
    %v599 = vsel %vm60, %v582, 0
    %v602 = vsel %vm60, %v583, 0
    %v605 = vsel %vm60, %v584, 0
    %v608 = vsel %vm60, %v585, 0
    %610 = vmatprep.subr.mxu0 0.0
    %611 = vmatpush1.msra.mxu0 0.0
    %612 = vmatprep.subr.mxu0 0.0
    %613 = vmatpush1.msra.mxu0 0.0
    %614 = vmatprep.subr.mxu0 0.0
    %615 = vmatpush1.msra.mxu0 0.0
    %616 = vmatprep.subr.mxu0 0.0
    %617 = vmatpush1.msra.mxu0 0.0
    %618 = vmatprep.subr.mxu0 0.0
    %619 = vmatpush1.msra.mxu0 0.0
    %620 = vmatprep.subr.mxu0 0.0
    %621 = vmatpush1.msra.mxu0 0.0
    %622 = vmatprep.subr.mxu0 0.0
    %623 = vmatpush1.msra.mxu0 0.0
    %624 = vmatprep.subr.mxu0 0.0
    %625 = vmatpush1.msra.mxu0 0.0
    %626 = vmatprep.subr.mxu0 0.0
    %627 = vmatpush1.msra.mxu0 0.0
    %628 = vmatprep.subr.mxu0 0.0
    %629 = vmatpush1.msra.mxu0 0.0
    %630 = vmatprep.subr.mxu0 0.0
    %631 = vmatpush1.msra.mxu0 0.0
    %632 = vmatprep.subr.mxu0 0.0
    %633 = vmatpush1.msra.mxu0 0.0
    %634 = vmatprep.subr.mxu0 0.0
    %635 = vmatpush1.msra.mxu0 %v593
    %636 = vmatprep.subr.mxu0 0.0
    %637 = vmatpush1.msra.mxu0 %v591
    %638 = vmatprep.subr.mxu0 0.0
    %639 = vmatpush1.msra.mxu0 %v589
    %640 = vmatprep.subr.mxu0 0.0
    %641 = vmatpush1.msra.mxu0 %v587
    %642 = vmatprep.subr.mxu0 0.0
    %643 = vmatpush2.msra.mxu0 0.0
    %644 = vmatprep.subr.mxu0 0.0
    %645 = vmatpush2.msra.mxu0 0.0
    %646 = vmatprep.subr.mxu0 0.0
    %647 = vmatpush2.msra.mxu0 0.0
    %648 = vmatprep.subr.mxu0 0.0
    %649 = vmatpush2.msra.mxu0 0.0
    %650 = vmatprep.subr.mxu0 0.0
    %651 = vmatpush2.msra.mxu0 0.0
    %652 = vmatprep.subr.mxu0 0.0
    %653 = vmatpush2.msra.mxu0 0.0
    %654 = vmatprep.subr.mxu0 0.0
    %655 = vmatpush2.msra.mxu0 0.0
    %656 = vmatprep.subr.mxu0 0.0
    %657 = vmatpush2.msra.mxu0 0.0
    %658 = vmatprep.subr.mxu0 0.0
    %659 = vmatpush2.msra.mxu0 0.0
    %660 = vmatprep.subr.mxu0 0.0
    %661 = vmatpush2.msra.mxu0 0.0
    %662 = vmatprep.subr.mxu0 0.0
    %663 = vmatpush2.msra.mxu0 0.0
    %664 = vmatprep.subr.mxu0 0.0
    %665 = vmatpush2.msra.mxu0 0.0
    %666 = vmatprep.subr.mxu0 0.0
    %667 = vmatpush2.msra.mxu0 0.0
    %668 = vmatprep.subr.mxu0 0.0
    %669 = vmatpush2.msra.mxu0 0.0
    %670 = vmatprep.subr.mxu0 0.0
    %671 = vmatpush2.msra.mxu0 0.0
    %672 = vmatprep.subr.mxu0 0.0
    %673 = vmatpush2.msra.mxu0 0.0
    %674 = vmatprep.mubr.f32.mxu0 0.0
    %675 = vmatmul.mubr.f32.gmra.mxu0 %v599
    %v676 = vpop.f32.mrf.mxu0
    %v677 = vadd.f32 0.0, %v676
    %v678 = vpop.f32.mrf.mxu0
    %679 = vmatprep.mubr.f32.mxu0 0.0
    %680 = vmatmul.mubr.f32.gmra.mxu0 %v602
    %v681 = vpop.f32.mrf.mxu0
    %v682 = vadd.f32 0.0, %v681
    %v683 = vpop.f32.mrf.mxu0
    %684 = vmatprep.mubr.f32.mxu0 0.0
    %685 = vmatmul.mubr.f32.gmra.mxu0 %v605
    %v686 = vpop.f32.mrf.mxu0
    %v687 = vadd.f32 0.0, %v686
    %v688 = vpop.f32.mrf.mxu0
    %689 = vmatprep.mubr.f32.mxu0 0.0
    %690 = vmatmul.mubr.f32.gmra.mxu0 %v608
    %v691 = vpop.f32.mrf.mxu0
    %v692 = vadd.f32 0.0, %v691
    %v693 = vpop.f32.mrf.mxu0
    %694 = vdwg.mxu0
    %696 = vrot.lane.b32.xlu0 %v38, 32
    %v697 = vpop.permute.xlu0 %696
    %v700 = vsel %vm170, %v677, 0
    %v703 = vsel %vm170, %v682, 0
    %v706 = vsel %vm170, %v687, 0
    %v709 = vsel %vm170, %v692, 0
    %711 = vmatprep.subr.mxu0 0.0
    %712 = vmatpush1.msra.mxu0 0.0
    %713 = vmatprep.subr.mxu0 0.0
    %714 = vmatpush1.msra.mxu0 0.0
    %715 = vmatprep.subr.mxu0 0.0
    %716 = vmatpush1.msra.mxu0 0.0
    %717 = vmatprep.subr.mxu0 0.0
    %718 = vmatpush1.msra.mxu0 0.0
    %719 = vmatprep.subr.mxu0 0.0
    %720 = vmatpush1.msra.mxu0 0.0
    %721 = vmatprep.subr.mxu0 0.0
    %722 = vmatpush1.msra.mxu0 0.0
    %723 = vmatprep.subr.mxu0 0.0
    %724 = vmatpush1.msra.mxu0 0.0
    %725 = vmatprep.subr.mxu0 0.0
    %726 = vmatpush1.msra.mxu0 0.0
    %727 = vmatprep.subr.mxu0 0.0
    %728 = vmatpush1.msra.mxu0 0.0
    %729 = vmatprep.subr.mxu0 0.0
    %730 = vmatpush1.msra.mxu0 0.0
    %731 = vmatprep.subr.mxu0 0.0
    %732 = vmatpush1.msra.mxu0 0.0
    %733 = vmatprep.subr.mxu0 0.0
    %734 = vmatpush1.msra.mxu0 0.0
    %735 = vmatprep.subr.mxu0 0.0
    %736 = vmatpush1.msra.mxu0 0.0
    %737 = vmatprep.subr.mxu0 0.0
    %738 = vmatpush1.msra.mxu0 0.0
    %739 = vmatprep.subr.mxu0 0.0
    %740 = vmatpush1.msra.mxu0 0.0
    %741 = vmatprep.subr.mxu0 0.0
    %742 = vmatpush1.msra.mxu0 %v697
    %743 = vmatprep.subr.mxu0 0.0
    %744 = vmatpush2.msra.mxu0 0.0
    %745 = vmatprep.subr.mxu0 0.0
    %746 = vmatpush2.msra.mxu0 0.0
    %747 = vmatprep.subr.mxu0 0.0
    %748 = vmatpush2.msra.mxu0 0.0
    %749 = vmatprep.subr.mxu0 0.0
    %750 = vmatpush2.msra.mxu0 0.0
    %751 = vmatprep.subr.mxu0 0.0
    %752 = vmatpush2.msra.mxu0 0.0
    %753 = vmatprep.subr.mxu0 0.0
    %754 = vmatpush2.msra.mxu0 0.0
    %755 = vmatprep.subr.mxu0 0.0
    %756 = vmatpush2.msra.mxu0 0.0
    %757 = vmatprep.subr.mxu0 0.0
    %758 = vmatpush2.msra.mxu0 0.0
    %759 = vmatprep.subr.mxu0 0.0
    %760 = vmatpush2.msra.mxu0 0.0
    %761 = vmatprep.subr.mxu0 0.0
    %762 = vmatpush2.msra.mxu0 0.0
    %763 = vmatprep.subr.mxu0 0.0
    %764 = vmatpush2.msra.mxu0 0.0
    %765 = vmatprep.subr.mxu0 0.0
    %766 = vmatpush2.msra.mxu0 0.0
    %767 = vmatprep.subr.mxu0 0.0
    %768 = vmatpush2.msra.mxu0 0.0
    %769 = vmatprep.subr.mxu0 0.0
    %770 = vmatpush2.msra.mxu0 0.0
    %771 = vmatprep.subr.mxu0 0.0
    %772 = vmatpush2.msra.mxu0 0.0
    %773 = vmatprep.subr.mxu0 0.0
    %774 = vmatpush2.msra.mxu0 0.0
    %775 = vmatprep.mubr.f32.mxu0 0.0
    %776 = vmatmul.mubr.f32.gmra.mxu0 %v700
    %v777 = vpop.f32.mrf.mxu0
    %v778 = vadd.f32 0.0, %v777
    %v779 = vpop.f32.mrf.mxu0
    %780 = vmatprep.mubr.f32.mxu0 0.0
    %781 = vmatmul.mubr.f32.gmra.mxu0 %v703
    %v782 = vpop.f32.mrf.mxu0
    %v783 = vadd.f32 0.0, %v782
    %v784 = vpop.f32.mrf.mxu0
    %785 = vmatprep.mubr.f32.mxu0 0.0
    %786 = vmatmul.mubr.f32.gmra.mxu0 %v706
    %v787 = vpop.f32.mrf.mxu0
    %v788 = vadd.f32 0.0, %v787
    %v789 = vpop.f32.mrf.mxu0
    %790 = vmatprep.mubr.f32.mxu0 0.0
    %791 = vmatmul.mubr.f32.gmra.mxu0 %v709
    %v792 = vpop.f32.mrf.mxu0
    %v793 = vadd.f32 0.0, %v792
    %v794 = vpop.f32.mrf.mxu0
    %795 = vdwg.mxu0
    %797 = vrot.lane.b32.xlu0 %v37, 32
    %v798 = vpop.permute.xlu0 %797
    %v801 = vsel %vm170, %v407, 0
    %v804 = vsel %vm170, %v412, 0
    %v807 = vsel %vm170, %v417, 0
    %v810 = vsel %vm170, %v422, 0
    %812 = vmatprep.subr.mxu0 0.0
    %813 = vmatpush1.msra.mxu0 0.0
    %814 = vmatprep.subr.mxu0 0.0
    %815 = vmatpush1.msra.mxu0 0.0
    %816 = vmatprep.subr.mxu0 0.0
    %817 = vmatpush1.msra.mxu0 0.0
    %818 = vmatprep.subr.mxu0 0.0
    %819 = vmatpush1.msra.mxu0 0.0
    %820 = vmatprep.subr.mxu0 0.0
    %821 = vmatpush1.msra.mxu0 0.0
    %822 = vmatprep.subr.mxu0 0.0
    %823 = vmatpush1.msra.mxu0 0.0
    %824 = vmatprep.subr.mxu0 0.0
    %825 = vmatpush1.msra.mxu0 0.0
    %826 = vmatprep.subr.mxu0 0.0
    %827 = vmatpush1.msra.mxu0 0.0
    %828 = vmatprep.subr.mxu0 0.0
    %829 = vmatpush1.msra.mxu0 0.0
    %830 = vmatprep.subr.mxu0 0.0
    %831 = vmatpush1.msra.mxu0 0.0
    %832 = vmatprep.subr.mxu0 0.0
    %833 = vmatpush1.msra.mxu0 0.0
    %834 = vmatprep.subr.mxu0 0.0
    %835 = vmatpush1.msra.mxu0 0.0
    %836 = vmatprep.subr.mxu0 0.0
    %837 = vmatpush1.msra.mxu0 0.0
    %838 = vmatprep.subr.mxu0 0.0
    %839 = vmatpush1.msra.mxu0 0.0
    %840 = vmatprep.subr.mxu0 0.0
    %841 = vmatpush1.msra.mxu0 0.0
    %842 = vmatprep.subr.mxu0 0.0
    %843 = vmatpush1.msra.mxu0 %v798
    %844 = vmatprep.subr.mxu0 0.0
    %845 = vmatpush2.msra.mxu0 0.0
    %846 = vmatprep.subr.mxu0 0.0
    %847 = vmatpush2.msra.mxu0 0.0
    %848 = vmatprep.subr.mxu0 0.0
    %849 = vmatpush2.msra.mxu0 0.0
    %850 = vmatprep.subr.mxu0 0.0
    %851 = vmatpush2.msra.mxu0 0.0
    %852 = vmatprep.subr.mxu0 0.0
    %853 = vmatpush2.msra.mxu0 0.0
    %854 = vmatprep.subr.mxu0 0.0
    %855 = vmatpush2.msra.mxu0 0.0
    %856 = vmatprep.subr.mxu0 0.0
    %857 = vmatpush2.msra.mxu0 0.0
    %858 = vmatprep.subr.mxu0 0.0
    %859 = vmatpush2.msra.mxu0 0.0
    %860 = vmatprep.subr.mxu0 0.0
    %861 = vmatpush2.msra.mxu0 0.0
    %862 = vmatprep.subr.mxu0 0.0
    %863 = vmatpush2.msra.mxu0 0.0
    %864 = vmatprep.subr.mxu0 0.0
    %865 = vmatpush2.msra.mxu0 0.0
    %866 = vmatprep.subr.mxu0 0.0
    %867 = vmatpush2.msra.mxu0 0.0
    %868 = vmatprep.subr.mxu0 0.0
    %869 = vmatpush2.msra.mxu0 0.0
    %870 = vmatprep.subr.mxu0 0.0
    %871 = vmatpush2.msra.mxu0 0.0
    %872 = vmatprep.subr.mxu0 0.0
    %873 = vmatpush2.msra.mxu0 0.0
    %874 = vmatprep.subr.mxu0 0.0
    %875 = vmatpush2.msra.mxu0 0.0
    %876 = vmatprep.mubr.f32.mxu0 0.0
    %877 = vmatmul.mubr.f32.gmra.mxu0 %v801
    %v878 = vpop.f32.mrf.mxu0
    %v879 = vadd.f32 %v778, %v878
    %v880 = vpop.f32.mrf.mxu0
    %881 = vmatprep.mubr.f32.mxu0 0.0
    %882 = vmatmul.mubr.f32.gmra.mxu0 %v804
    %v883 = vpop.f32.mrf.mxu0
    %v884 = vadd.f32 %v783, %v883
    %v885 = vpop.f32.mrf.mxu0
    %886 = vmatprep.mubr.f32.mxu0 0.0
    %887 = vmatmul.mubr.f32.gmra.mxu0 %v807
    %v888 = vpop.f32.mrf.mxu0
    %v889 = vadd.f32 %v788, %v888
    %v890 = vpop.f32.mrf.mxu0
    %891 = vmatprep.mubr.f32.mxu0 0.0
    %892 = vmatmul.mubr.f32.gmra.mxu0 %v810
    %v893 = vpop.f32.mrf.mxu0
    %v894 = vadd.f32 %v793, %v893
    %v895 = vpop.f32.mrf.mxu0
    %896 = vdwg.mxu0
    %897 = vrot.lane.b32.xlu0 %v140, 80
    %v898 = vpop.permute.xlu0 %897
    %899 = vrot.lane.b32.xlu0 %v145, 80
    %v900 = vpop.permute.xlu0 %899
    %901 = vrot.lane.b32.xlu0 %v150, 80
    %v902 = vpop.permute.xlu0 %901
    %903 = vrot.lane.b32.xlu0 %v155, 80
    %v904 = vpop.permute.xlu0 %903
    %905 = vrot.lane.b32.xlu0 %v140, 72
    %v906 = vpop.permute.xlu0 %905
    %907 = vrot.lane.b32.xlu0 %v145, 72
    %v908 = vpop.permute.xlu0 %907
    %909 = vrot.lane.b32.xlu0 %v150, 72
    %v910 = vpop.permute.xlu0 %909
    %911 = vrot.lane.b32.xlu0 %v155, 72
    %v912 = vpop.permute.xlu0 %911
    %v913 = vsel %vm170, %v898, 0
    %v915 = vsel %vm170, %v900, 0
    %v917 = vsel %vm170, %v902, 0
    %v919 = vsel %vm170, %v904, 0
    %v921 = vsel %vm170, %v906, 0
    %v923 = vsel %vm170, %v908, 0
    %v925 = vsel %vm170, %v910, 0
    %v927 = vsel %vm170, %v912, 0
    %929 = vmatprep.subr.mxu0 0.0
    %930 = vmatpush1.xpose.msra.mxu0 0.0
    %931 = vmatprep.subr.mxu0 0.0
    %932 = vmatpush1.xpose.msra.mxu0 0.0
    %933 = vmatprep.subr.mxu0 0.0
    %934 = vmatpush1.xpose.msra.mxu0 0.0
    %935 = vmatprep.subr.mxu0 0.0
    %936 = vmatpush1.xpose.msra.mxu0 0.0
    %937 = vmatprep.subr.mxu0 0.0
    %938 = vmatpush1.xpose.msra.mxu0 0.0
    %939 = vmatprep.subr.mxu0 0.0
    %940 = vmatpush1.xpose.msra.mxu0 0.0
    %941 = vmatprep.subr.mxu0 0.0
    %942 = vmatpush1.xpose.msra.mxu0 0.0
    %943 = vmatprep.subr.mxu0 0.0
    %944 = vmatpush1.xpose.msra.mxu0 0.0
    %945 = vmatprep.subr.mxu0 0.0
    %946 = vmatpush1.xpose.msra.mxu0 0.0
    %947 = vmatprep.subr.mxu0 0.0
    %948 = vmatpush1.xpose.msra.mxu0 0.0
    %949 = vmatprep.subr.mxu0 0.0
    %950 = vmatpush1.xpose.msra.mxu0 0.0
    %951 = vmatprep.subr.mxu0 0.0
    %952 = vmatpush1.xpose.msra.mxu0 0.0
    %953 = vmatprep.subr.mxu0 0.0
    %954 = vmatpush1.xpose.msra.mxu0 %v927
    %955 = vmatprep.subr.mxu0 0.0
    %956 = vmatpush1.xpose.msra.mxu0 %v925
    %957 = vmatprep.subr.mxu0 0.0
    %958 = vmatpush1.xpose.msra.mxu0 %v923
    %959 = vmatprep.subr.mxu0 0.0
    %960 = vmatpush1.xpose.msra.mxu0 %v921
    %961 = vmatprep.subr.mxu0 0.0
    %962 = vmatpush2.xpose.msra.mxu0 0.0
    %963 = vmatprep.subr.mxu0 0.0
    %964 = vmatpush2.xpose.msra.mxu0 0.0
    %965 = vmatprep.subr.mxu0 0.0
    %966 = vmatpush2.xpose.msra.mxu0 0.0
    %967 = vmatprep.subr.mxu0 0.0
    %968 = vmatpush2.xpose.msra.mxu0 0.0
    %969 = vmatprep.subr.mxu0 0.0
    %970 = vmatpush2.xpose.msra.mxu0 0.0
    %971 = vmatprep.subr.mxu0 0.0
    %972 = vmatpush2.xpose.msra.mxu0 0.0
    %973 = vmatprep.subr.mxu0 0.0
    %974 = vmatpush2.xpose.msra.mxu0 0.0
    %975 = vmatprep.subr.mxu0 0.0
    %976 = vmatpush2.xpose.msra.mxu0 0.0
    %977 = vmatprep.subr.mxu0 0.0
    %978 = vmatpush2.xpose.msra.mxu0 0.0
    %979 = vmatprep.subr.mxu0 0.0
    %980 = vmatpush2.xpose.msra.mxu0 0.0
    %981 = vmatprep.subr.mxu0 0.0
    %982 = vmatpush2.xpose.msra.mxu0 0.0
    %983 = vmatprep.subr.mxu0 0.0
    %984 = vmatpush2.xpose.msra.mxu0 0.0
    %985 = vmatprep.subr.mxu0 0.0
    %986 = vmatpush2.xpose.msra.mxu0 0.0
    %987 = vmatprep.subr.mxu0 0.0
    %988 = vmatpush2.xpose.msra.mxu0 0.0
    %989 = vmatprep.subr.mxu0 0.0
    %990 = vmatpush2.xpose.msra.mxu0 0.0
    %991 = vmatprep.subr.mxu0 0.0
    %992 = vmatpush2.xpose.msra.mxu0 0.0
    %993 = vmatprep.mubr.f32.mxu0 0.0
    %994 = vmatmul.mubr.f32.gmra.mxu0 %v913
    %v995 = vpop.f32.mrf.mxu0
    %v996 = vadd.f32 %v33, %v995
    %v997 = vpop.f32.mrf.mxu0
    %998 = vmatprep.mubr.f32.mxu0 0.0
    %999 = vmatmul.mubr.f32.gmra.mxu0 %v915
    %v1000 = vpop.f32.mrf.mxu0
    %v1001 = vadd.f32 %v34, %v1000
    %v1002 = vpop.f32.mrf.mxu0
    %1003 = vmatprep.mubr.f32.mxu0 0.0
    %1004 = vmatmul.mubr.f32.gmra.mxu0 %v917
    %v1005 = vpop.f32.mrf.mxu0
    %v1006 = vadd.f32 %v35, %v1005
    %v1007 = vpop.f32.mrf.mxu0
    %1008 = vmatprep.mubr.f32.mxu0 0.0
    %1009 = vmatmul.mubr.f32.gmra.mxu0 %v919
    %v1010 = vpop.f32.mrf.mxu0
    %v1011 = vadd.f32 %v36, %v1010
    %v1012 = vpop.f32.mrf.mxu0
    %1013 = vdwg.mxu0
    %v1014 = vsel %vm60, %v996, -inf
    %1015 = vmax.xlane.f32.xlu0 %v1014
    %v1016 = vpop.xlane.xlu0 %1015
    %v1017 = vsel %vm60, %v1001, -inf
    %1018 = vmax.xlane.f32.xlu0 %v1017
    %v1019 = vpop.xlane.xlu0 %1018
    %v1020 = vsel %vm60, %v1006, -inf
    %1021 = vmax.xlane.f32.xlu0 %v1020
    %v1022 = vpop.xlane.xlu0 %1021
    %v1023 = vsel %vm60, %v1011, -inf
    %1024 = vmax.xlane.f32.xlu0 %v1023
    %v1025 = vpop.xlane.xlu0 %1024
    %v1026 = vsub.f32 %v996, %v1016
    %v1027 = vsub.f32 %v1001, %v1019
    %v1028 = vsub.f32 %v1006, %v1022
    %v1029 = vsub.f32 %v1011, %v1025
    %v1030 = vmul.f32 %v1026, 1.442695
    %v1031 = vpow.pop %v1030
    %v1032 = vmul.f32 %v1027, 1.442695
    %v1033 = vpow.pop %v1032
    %v1034 = vmul.f32 %v1028, 1.442695
    %v1035 = vpow.pop %v1034
    %v1036 = vmul.f32 %v1029, 1.442695
    %v1037 = vpow.pop %v1036
    %v1038 = vsel %vm60, %v1031, 0.0
    %1039 = vadd.xlane.f32.xlu0 %v1038
    %v1040 = vpop.xlane.xlu0 %1039
    %v1041 = vsel %vm60, %v1033, 0.0
    %1042 = vadd.xlane.f32.xlu0 %v1041
    %v1043 = vpop.xlane.xlu0 %1042
    %v1044 = vsel %vm60, %v1035, 0.0
    %1045 = vadd.xlane.f32.xlu0 %v1044
    %v1046 = vpop.xlane.xlu0 %1045
    %v1047 = vsel %vm60, %v1037, 0.0
    %1048 = vadd.xlane.f32.xlu0 %v1047
    %v1049 = vpop.xlane.xlu0 %1048
    %v1050 = vrcp.pop %v1040
    %v1051 = vrcp.pop %v1043
    %v1052 = vrcp.pop %v1046
    %v1053 = vrcp.pop %v1049
    %v1054 = vmul.f32 %v1031, %v1050
    %v1055 = vmul.f32 %v1033, %v1051
    %v1056 = vmul.f32 %v1035, %v1052
    %v1057 = vmul.f32 %v1037, %v1053
    %1058 = vrot.lane.b32.xlu0 %v140, 64
    %v1059 = vpop.permute.xlu0 %1058
    %1060 = vrot.lane.b32.xlu0 %v145, 64
    %v1061 = vpop.permute.xlu0 %1060
    %1062 = vrot.lane.b32.xlu0 %v150, 64
    %v1063 = vpop.permute.xlu0 %1062
    %1064 = vrot.lane.b32.xlu0 %v155, 64
    %v1065 = vpop.permute.xlu0 %1064
    %v1071 = vsel %vm60, %v1054, 0
    %v1074 = vsel %vm60, %v1055, 0
    %v1077 = vsel %vm60, %v1056, 0
    %v1080 = vsel %vm60, %v1057, 0
    %1082 = vmatprep.subr.mxu0 0.0
    %1083 = vmatpush1.msra.mxu0 0.0
    %1084 = vmatprep.subr.mxu0 0.0
    %1085 = vmatpush1.msra.mxu0 0.0
    %1086 = vmatprep.subr.mxu0 0.0
    %1087 = vmatpush1.msra.mxu0 0.0
    %1088 = vmatprep.subr.mxu0 0.0
    %1089 = vmatpush1.msra.mxu0 0.0
    %1090 = vmatprep.subr.mxu0 0.0
    %1091 = vmatpush1.msra.mxu0 0.0
    %1092 = vmatprep.subr.mxu0 0.0
    %1093 = vmatpush1.msra.mxu0 0.0
    %1094 = vmatprep.subr.mxu0 0.0
    %1095 = vmatpush1.msra.mxu0 0.0
    %1096 = vmatprep.subr.mxu0 0.0
    %1097 = vmatpush1.msra.mxu0 0.0
    %1098 = vmatprep.subr.mxu0 0.0
    %1099 = vmatpush1.msra.mxu0 0.0
    %1100 = vmatprep.subr.mxu0 0.0
    %1101 = vmatpush1.msra.mxu0 0.0
    %1102 = vmatprep.subr.mxu0 0.0
    %1103 = vmatpush1.msra.mxu0 0.0
    %1104 = vmatprep.subr.mxu0 0.0
    %1105 = vmatpush1.msra.mxu0 0.0
    %1106 = vmatprep.subr.mxu0 0.0
    %1107 = vmatpush1.msra.mxu0 %v1065
    %1108 = vmatprep.subr.mxu0 0.0
    %1109 = vmatpush1.msra.mxu0 %v1063
    %1110 = vmatprep.subr.mxu0 0.0
    %1111 = vmatpush1.msra.mxu0 %v1061
    %1112 = vmatprep.subr.mxu0 0.0
    %1113 = vmatpush1.msra.mxu0 %v1059
    %1114 = vmatprep.subr.mxu0 0.0
    %1115 = vmatpush2.msra.mxu0 0.0
    %1116 = vmatprep.subr.mxu0 0.0
    %1117 = vmatpush2.msra.mxu0 0.0
    %1118 = vmatprep.subr.mxu0 0.0
    %1119 = vmatpush2.msra.mxu0 0.0
    %1120 = vmatprep.subr.mxu0 0.0
    %1121 = vmatpush2.msra.mxu0 0.0
    %1122 = vmatprep.subr.mxu0 0.0
    %1123 = vmatpush2.msra.mxu0 0.0
    %1124 = vmatprep.subr.mxu0 0.0
    %1125 = vmatpush2.msra.mxu0 0.0
    %1126 = vmatprep.subr.mxu0 0.0
    %1127 = vmatpush2.msra.mxu0 0.0
    %1128 = vmatprep.subr.mxu0 0.0
    %1129 = vmatpush2.msra.mxu0 0.0
    %1130 = vmatprep.subr.mxu0 0.0
    %1131 = vmatpush2.msra.mxu0 0.0
    %1132 = vmatprep.subr.mxu0 0.0
    %1133 = vmatpush2.msra.mxu0 0.0
    %1134 = vmatprep.subr.mxu0 0.0
    %1135 = vmatpush2.msra.mxu0 0.0
    %1136 = vmatprep.subr.mxu0 0.0
    %1137 = vmatpush2.msra.mxu0 0.0
    %1138 = vmatprep.subr.mxu0 0.0
    %1139 = vmatpush2.msra.mxu0 0.0
    %1140 = vmatprep.subr.mxu0 0.0
    %1141 = vmatpush2.msra.mxu0 0.0
    %1142 = vmatprep.subr.mxu0 0.0
    %1143 = vmatpush2.msra.mxu0 0.0
    %1144 = vmatprep.subr.mxu0 0.0
    %1145 = vmatpush2.msra.mxu0 0.0
    %1146 = vmatprep.mubr.f32.mxu0 0.0
    %1147 = vmatmul.mubr.f32.gmra.mxu0 %v1071
    %v1148 = vpop.f32.mrf.mxu0
    %v1149 = vadd.f32 0.0, %v1148
    %v1150 = vpop.f32.mrf.mxu0
    %1151 = vmatprep.mubr.f32.mxu0 0.0
    %1152 = vmatmul.mubr.f32.gmra.mxu0 %v1074
    %v1153 = vpop.f32.mrf.mxu0
    %v1154 = vadd.f32 0.0, %v1153
    %v1155 = vpop.f32.mrf.mxu0
    %1156 = vmatprep.mubr.f32.mxu0 0.0
    %1157 = vmatmul.mubr.f32.gmra.mxu0 %v1077
    %v1158 = vpop.f32.mrf.mxu0
    %v1159 = vadd.f32 0.0, %v1158
    %v1160 = vpop.f32.mrf.mxu0
    %1161 = vmatprep.mubr.f32.mxu0 0.0
    %1162 = vmatmul.mubr.f32.gmra.mxu0 %v1080
    %v1163 = vpop.f32.mrf.mxu0
    %v1164 = vadd.f32 0.0, %v1163
    %v1165 = vpop.f32.mrf.mxu0
    %1166 = vdwg.mxu0
    %1168 = vrot.lane.b32.xlu0 %v39, 32
    %v1169 = vpop.permute.xlu0 %1168
    %v1172 = vsel %vm170, %v1149, 0
    %v1175 = vsel %vm170, %v1154, 0
    %v1178 = vsel %vm170, %v1159, 0
    %v1181 = vsel %vm170, %v1164, 0
    %1183 = vmatprep.subr.mxu0 0.0
    %1184 = vmatpush1.msra.mxu0 0.0
    %1185 = vmatprep.subr.mxu0 0.0
    %1186 = vmatpush1.msra.mxu0 0.0
    %1187 = vmatprep.subr.mxu0 0.0
    %1188 = vmatpush1.msra.mxu0 0.0
    %1189 = vmatprep.subr.mxu0 0.0
    %1190 = vmatpush1.msra.mxu0 0.0
    %1191 = vmatprep.subr.mxu0 0.0
    %1192 = vmatpush1.msra.mxu0 0.0
    %1193 = vmatprep.subr.mxu0 0.0
    %1194 = vmatpush1.msra.mxu0 0.0
    %1195 = vmatprep.subr.mxu0 0.0
    %1196 = vmatpush1.msra.mxu0 0.0
    %1197 = vmatprep.subr.mxu0 0.0
    %1198 = vmatpush1.msra.mxu0 0.0
    %1199 = vmatprep.subr.mxu0 0.0
    %1200 = vmatpush1.msra.mxu0 0.0
    %1201 = vmatprep.subr.mxu0 0.0
    %1202 = vmatpush1.msra.mxu0 0.0
    %1203 = vmatprep.subr.mxu0 0.0
    %1204 = vmatpush1.msra.mxu0 0.0
    %1205 = vmatprep.subr.mxu0 0.0
    %1206 = vmatpush1.msra.mxu0 0.0
    %1207 = vmatprep.subr.mxu0 0.0
    %1208 = vmatpush1.msra.mxu0 0.0
    %1209 = vmatprep.subr.mxu0 0.0
    %1210 = vmatpush1.msra.mxu0 0.0
    %1211 = vmatprep.subr.mxu0 0.0
    %1212 = vmatpush1.msra.mxu0 0.0
    %1213 = vmatprep.subr.mxu0 0.0
    %1214 = vmatpush1.msra.mxu0 %v1169
    %1215 = vmatprep.subr.mxu0 0.0
    %1216 = vmatpush2.msra.mxu0 0.0
    %1217 = vmatprep.subr.mxu0 0.0
    %1218 = vmatpush2.msra.mxu0 0.0
    %1219 = vmatprep.subr.mxu0 0.0
    %1220 = vmatpush2.msra.mxu0 0.0
    %1221 = vmatprep.subr.mxu0 0.0
    %1222 = vmatpush2.msra.mxu0 0.0
    %1223 = vmatprep.subr.mxu0 0.0
    %1224 = vmatpush2.msra.mxu0 0.0
    %1225 = vmatprep.subr.mxu0 0.0
    %1226 = vmatpush2.msra.mxu0 0.0
    %1227 = vmatprep.subr.mxu0 0.0
    %1228 = vmatpush2.msra.mxu0 0.0
    %1229 = vmatprep.subr.mxu0 0.0
    %1230 = vmatpush2.msra.mxu0 0.0
    %1231 = vmatprep.subr.mxu0 0.0
    %1232 = vmatpush2.msra.mxu0 0.0
    %1233 = vmatprep.subr.mxu0 0.0
    %1234 = vmatpush2.msra.mxu0 0.0
    %1235 = vmatprep.subr.mxu0 0.0
    %1236 = vmatpush2.msra.mxu0 0.0
    %1237 = vmatprep.subr.mxu0 0.0
    %1238 = vmatpush2.msra.mxu0 0.0
    %1239 = vmatprep.subr.mxu0 0.0
    %1240 = vmatpush2.msra.mxu0 0.0
    %1241 = vmatprep.subr.mxu0 0.0
    %1242 = vmatpush2.msra.mxu0 0.0
    %1243 = vmatprep.subr.mxu0 0.0
    %1244 = vmatpush2.msra.mxu0 0.0
    %1245 = vmatprep.subr.mxu0 0.0
    %1246 = vmatpush2.msra.mxu0 0.0
    %1247 = vmatprep.mubr.f32.mxu0 0.0
    %1248 = vmatmul.mubr.f32.gmra.mxu0 %v1172
    %v1249 = vpop.f32.mrf.mxu0
    %v1250 = vadd.f32 0.0, %v1249
    %v1251 = vpop.f32.mrf.mxu0
    %1252 = vmatprep.mubr.f32.mxu0 0.0
    %1253 = vmatmul.mubr.f32.gmra.mxu0 %v1175
    %v1254 = vpop.f32.mrf.mxu0
    %v1255 = vadd.f32 0.0, %v1254
    %v1256 = vpop.f32.mrf.mxu0
    %1257 = vmatprep.mubr.f32.mxu0 0.0
    %1258 = vmatmul.mubr.f32.gmra.mxu0 %v1178
    %v1259 = vpop.f32.mrf.mxu0
    %v1260 = vadd.f32 0.0, %v1259
    %v1261 = vpop.f32.mrf.mxu0
    %1262 = vmatprep.mubr.f32.mxu0 0.0
    %1263 = vmatmul.mubr.f32.gmra.mxu0 %v1181
    %v1264 = vpop.f32.mrf.mxu0
    %v1265 = vadd.f32 0.0, %v1264
    %v1266 = vpop.f32.mrf.mxu0
    %1267 = vdwg.mxu0
    %v1268 = vadd.f32 %v879, %v1250
    %v1269 = vadd.f32 %v884, %v1255
    %v1270 = vadd.f32 %v889, %v1260
    %v1271 = vadd.f32 %v894, %v1265
    %1272 = vrot.lane.b32.xlu0 %v140, 56
    %v1273 = vpop.permute.xlu0 %1272
    %1274 = vrot.lane.b32.xlu0 %v145, 56
    %v1275 = vpop.permute.xlu0 %1274
    %1276 = vrot.lane.b32.xlu0 %v150, 56
    %v1277 = vpop.permute.xlu0 %1276
    %1278 = vrot.lane.b32.xlu0 %v155, 56
    %v1279 = vpop.permute.xlu0 %1278
    %1280 = vrot.lane.b32.xlu0 %v140, 48
    %v1281 = vpop.permute.xlu0 %1280
    %1282 = vrot.lane.b32.xlu0 %v145, 48
    %v1283 = vpop.permute.xlu0 %1282
    %1284 = vrot.lane.b32.xlu0 %v150, 48
    %v1285 = vpop.permute.xlu0 %1284
    %1286 = vrot.lane.b32.xlu0 %v155, 48
    %v1287 = vpop.permute.xlu0 %1286
    %v1288 = vsel %vm170, %v1273, 0
    %v1290 = vsel %vm170, %v1275, 0
    %v1292 = vsel %vm170, %v1277, 0
    %v1294 = vsel %vm170, %v1279, 0
    %v1296 = vsel %vm170, %v1281, 0
    %v1298 = vsel %vm170, %v1283, 0
    %v1300 = vsel %vm170, %v1285, 0
    %v1302 = vsel %vm170, %v1287, 0
    %1304 = vmatprep.subr.mxu0 0.0
    %1305 = vmatpush1.xpose.msra.mxu0 0.0
    %1306 = vmatprep.subr.mxu0 0.0
    %1307 = vmatpush1.xpose.msra.mxu0 0.0
    %1308 = vmatprep.subr.mxu0 0.0
    %1309 = vmatpush1.xpose.msra.mxu0 0.0
    %1310 = vmatprep.subr.mxu0 0.0
    %1311 = vmatpush1.xpose.msra.mxu0 0.0
    %1312 = vmatprep.subr.mxu0 0.0
    %1313 = vmatpush1.xpose.msra.mxu0 0.0
    %1314 = vmatprep.subr.mxu0 0.0
    %1315 = vmatpush1.xpose.msra.mxu0 0.0
    %1316 = vmatprep.subr.mxu0 0.0
    %1317 = vmatpush1.xpose.msra.mxu0 0.0
    %1318 = vmatprep.subr.mxu0 0.0
    %1319 = vmatpush1.xpose.msra.mxu0 0.0
    %1320 = vmatprep.subr.mxu0 0.0
    %1321 = vmatpush1.xpose.msra.mxu0 0.0
    %1322 = vmatprep.subr.mxu0 0.0
    %1323 = vmatpush1.xpose.msra.mxu0 0.0
    %1324 = vmatprep.subr.mxu0 0.0
    %1325 = vmatpush1.xpose.msra.mxu0 0.0
    %1326 = vmatprep.subr.mxu0 0.0
    %1327 = vmatpush1.xpose.msra.mxu0 0.0
    %1328 = vmatprep.subr.mxu0 0.0
    %1329 = vmatpush1.xpose.msra.mxu0 %v1302
    %1330 = vmatprep.subr.mxu0 0.0
    %1331 = vmatpush1.xpose.msra.mxu0 %v1300
    %1332 = vmatprep.subr.mxu0 0.0
    %1333 = vmatpush1.xpose.msra.mxu0 %v1298
    %1334 = vmatprep.subr.mxu0 0.0
    %1335 = vmatpush1.xpose.msra.mxu0 %v1296
    %1336 = vmatprep.subr.mxu0 0.0
    %1337 = vmatpush2.xpose.msra.mxu0 0.0
    %1338 = vmatprep.subr.mxu0 0.0
    %1339 = vmatpush2.xpose.msra.mxu0 0.0
    %1340 = vmatprep.subr.mxu0 0.0
    %1341 = vmatpush2.xpose.msra.mxu0 0.0
    %1342 = vmatprep.subr.mxu0 0.0
    %1343 = vmatpush2.xpose.msra.mxu0 0.0
    %1344 = vmatprep.subr.mxu0 0.0
    %1345 = vmatpush2.xpose.msra.mxu0 0.0
    %1346 = vmatprep.subr.mxu0 0.0
    %1347 = vmatpush2.xpose.msra.mxu0 0.0
    %1348 = vmatprep.subr.mxu0 0.0
    %1349 = vmatpush2.xpose.msra.mxu0 0.0
    %1350 = vmatprep.subr.mxu0 0.0
    %1351 = vmatpush2.xpose.msra.mxu0 0.0
    %1352 = vmatprep.subr.mxu0 0.0
    %1353 = vmatpush2.xpose.msra.mxu0 0.0
    %1354 = vmatprep.subr.mxu0 0.0
    %1355 = vmatpush2.xpose.msra.mxu0 0.0
    %1356 = vmatprep.subr.mxu0 0.0
    %1357 = vmatpush2.xpose.msra.mxu0 0.0
    %1358 = vmatprep.subr.mxu0 0.0
    %1359 = vmatpush2.xpose.msra.mxu0 0.0
    %1360 = vmatprep.subr.mxu0 0.0
    %1361 = vmatpush2.xpose.msra.mxu0 0.0
    %1362 = vmatprep.subr.mxu0 0.0
    %1363 = vmatpush2.xpose.msra.mxu0 0.0
    %1364 = vmatprep.subr.mxu0 0.0
    %1365 = vmatpush2.xpose.msra.mxu0 0.0
    %1366 = vmatprep.subr.mxu0 0.0
    %1367 = vmatpush2.xpose.msra.mxu0 0.0
    %1368 = vmatprep.mubr.f32.mxu0 0.0
    %1369 = vmatmul.mubr.f32.gmra.mxu0 %v1288
    %v1370 = vpop.f32.mrf.mxu0
    %v1371 = vadd.f32 %v33, %v1370
    %v1372 = vpop.f32.mrf.mxu0
    %1373 = vmatprep.mubr.f32.mxu0 0.0
    %1374 = vmatmul.mubr.f32.gmra.mxu0 %v1290
    %v1375 = vpop.f32.mrf.mxu0
    %v1376 = vadd.f32 %v34, %v1375
    %v1377 = vpop.f32.mrf.mxu0
    %1378 = vmatprep.mubr.f32.mxu0 0.0
    %1379 = vmatmul.mubr.f32.gmra.mxu0 %v1292
    %v1380 = vpop.f32.mrf.mxu0
    %v1381 = vadd.f32 %v35, %v1380
    %v1382 = vpop.f32.mrf.mxu0
    %1383 = vmatprep.mubr.f32.mxu0 0.0
    %1384 = vmatmul.mubr.f32.gmra.mxu0 %v1294
    %v1385 = vpop.f32.mrf.mxu0
    %v1386 = vadd.f32 %v36, %v1385
    %v1387 = vpop.f32.mrf.mxu0
    %1388 = vdwg.mxu0
    %v1389 = vsel %vm60, %v1371, -inf
    %1390 = vmax.xlane.f32.xlu0 %v1389
    %v1391 = vpop.xlane.xlu0 %1390
    %v1392 = vsel %vm60, %v1376, -inf
    %1393 = vmax.xlane.f32.xlu0 %v1392
    %v1394 = vpop.xlane.xlu0 %1393
    %v1395 = vsel %vm60, %v1381, -inf
    %1396 = vmax.xlane.f32.xlu0 %v1395
    %v1397 = vpop.xlane.xlu0 %1396
    %v1398 = vsel %vm60, %v1386, -inf
    %1399 = vmax.xlane.f32.xlu0 %v1398
    %v1400 = vpop.xlane.xlu0 %1399
    %v1401 = vsub.f32 %v1371, %v1391
    %v1402 = vsub.f32 %v1376, %v1394
    %v1403 = vsub.f32 %v1381, %v1397
    %v1404 = vsub.f32 %v1386, %v1400
    %v1405 = vmul.f32 %v1401, 1.442695
    %v1406 = vpow.pop %v1405
    %v1407 = vmul.f32 %v1402, 1.442695
    %v1408 = vpow.pop %v1407
    %v1409 = vmul.f32 %v1403, 1.442695
    %v1410 = vpow.pop %v1409
    %v1411 = vmul.f32 %v1404, 1.442695
    %v1412 = vpow.pop %v1411
    %v1413 = vsel %vm60, %v1406, 0.0
    %1414 = vadd.xlane.f32.xlu0 %v1413
    %v1415 = vpop.xlane.xlu0 %1414
    %v1416 = vsel %vm60, %v1408, 0.0
    %1417 = vadd.xlane.f32.xlu0 %v1416
    %v1418 = vpop.xlane.xlu0 %1417
    %v1419 = vsel %vm60, %v1410, 0.0
    %1420 = vadd.xlane.f32.xlu0 %v1419
    %v1421 = vpop.xlane.xlu0 %1420
    %v1422 = vsel %vm60, %v1412, 0.0
    %1423 = vadd.xlane.f32.xlu0 %v1422
    %v1424 = vpop.xlane.xlu0 %1423
    %v1425 = vrcp.pop %v1415
    %v1426 = vrcp.pop %v1418
    %v1427 = vrcp.pop %v1421
    %v1428 = vrcp.pop %v1424
    %v1429 = vmul.f32 %v1406, %v1425
    %v1430 = vmul.f32 %v1408, %v1426
    %v1431 = vmul.f32 %v1410, %v1427
    %v1432 = vmul.f32 %v1412, %v1428
    %1433 = vrot.lane.b32.xlu0 %v140, 40
    %v1434 = vpop.permute.xlu0 %1433
    %1435 = vrot.lane.b32.xlu0 %v145, 40
    %v1436 = vpop.permute.xlu0 %1435
    %1437 = vrot.lane.b32.xlu0 %v150, 40
    %v1438 = vpop.permute.xlu0 %1437
    %1439 = vrot.lane.b32.xlu0 %v155, 40
    %v1440 = vpop.permute.xlu0 %1439
    %v1446 = vsel %vm60, %v1429, 0
    %v1449 = vsel %vm60, %v1430, 0
    %v1452 = vsel %vm60, %v1431, 0
    %v1455 = vsel %vm60, %v1432, 0
    %1457 = vmatprep.subr.mxu0 0.0
    %1458 = vmatpush1.msra.mxu0 0.0
    %1459 = vmatprep.subr.mxu0 0.0
    %1460 = vmatpush1.msra.mxu0 0.0
    %1461 = vmatprep.subr.mxu0 0.0
    %1462 = vmatpush1.msra.mxu0 0.0
    %1463 = vmatprep.subr.mxu0 0.0
    %1464 = vmatpush1.msra.mxu0 0.0
    %1465 = vmatprep.subr.mxu0 0.0
    %1466 = vmatpush1.msra.mxu0 0.0
    %1467 = vmatprep.subr.mxu0 0.0
    %1468 = vmatpush1.msra.mxu0 0.0
    %1469 = vmatprep.subr.mxu0 0.0
    %1470 = vmatpush1.msra.mxu0 0.0
    %1471 = vmatprep.subr.mxu0 0.0
    %1472 = vmatpush1.msra.mxu0 0.0
    %1473 = vmatprep.subr.mxu0 0.0
    %1474 = vmatpush1.msra.mxu0 0.0
    %1475 = vmatprep.subr.mxu0 0.0
    %1476 = vmatpush1.msra.mxu0 0.0
    %1477 = vmatprep.subr.mxu0 0.0
    %1478 = vmatpush1.msra.mxu0 0.0
    %1479 = vmatprep.subr.mxu0 0.0
    %1480 = vmatpush1.msra.mxu0 0.0
    %1481 = vmatprep.subr.mxu0 0.0
    %1482 = vmatpush1.msra.mxu0 %v1440
    %1483 = vmatprep.subr.mxu0 0.0
    %1484 = vmatpush1.msra.mxu0 %v1438
    %1485 = vmatprep.subr.mxu0 0.0
    %1486 = vmatpush1.msra.mxu0 %v1436
    %1487 = vmatprep.subr.mxu0 0.0
    %1488 = vmatpush1.msra.mxu0 %v1434
    %1489 = vmatprep.subr.mxu0 0.0
    %1490 = vmatpush2.msra.mxu0 0.0
    %1491 = vmatprep.subr.mxu0 0.0
    %1492 = vmatpush2.msra.mxu0 0.0
    %1493 = vmatprep.subr.mxu0 0.0
    %1494 = vmatpush2.msra.mxu0 0.0
    %1495 = vmatprep.subr.mxu0 0.0
    %1496 = vmatpush2.msra.mxu0 0.0
    %1497 = vmatprep.subr.mxu0 0.0
    %1498 = vmatpush2.msra.mxu0 0.0
    %1499 = vmatprep.subr.mxu0 0.0
    %1500 = vmatpush2.msra.mxu0 0.0
    %1501 = vmatprep.subr.mxu0 0.0
    %1502 = vmatpush2.msra.mxu0 0.0
    %1503 = vmatprep.subr.mxu0 0.0
    %1504 = vmatpush2.msra.mxu0 0.0
    %1505 = vmatprep.subr.mxu0 0.0
    %1506 = vmatpush2.msra.mxu0 0.0
    %1507 = vmatprep.subr.mxu0 0.0
    %1508 = vmatpush2.msra.mxu0 0.0
    %1509 = vmatprep.subr.mxu0 0.0
    %1510 = vmatpush2.msra.mxu0 0.0
    %1511 = vmatprep.subr.mxu0 0.0
    %1512 = vmatpush2.msra.mxu0 0.0
    %1513 = vmatprep.subr.mxu0 0.0
    %1514 = vmatpush2.msra.mxu0 0.0
    %1515 = vmatprep.subr.mxu0 0.0
    %1516 = vmatpush2.msra.mxu0 0.0
    %1517 = vmatprep.subr.mxu0 0.0
    %1518 = vmatpush2.msra.mxu0 0.0
    %1519 = vmatprep.subr.mxu0 0.0
    %1520 = vmatpush2.msra.mxu0 0.0
    %1521 = vmatprep.mubr.f32.mxu0 0.0
    %1522 = vmatmul.mubr.f32.gmra.mxu0 %v1446
    %v1523 = vpop.f32.mrf.mxu0
    %v1524 = vadd.f32 0.0, %v1523
    %v1525 = vpop.f32.mrf.mxu0
    %1526 = vmatprep.mubr.f32.mxu0 0.0
    %1527 = vmatmul.mubr.f32.gmra.mxu0 %v1449
    %v1528 = vpop.f32.mrf.mxu0
    %v1529 = vadd.f32 0.0, %v1528
    %v1530 = vpop.f32.mrf.mxu0
    %1531 = vmatprep.mubr.f32.mxu0 0.0
    %1532 = vmatmul.mubr.f32.gmra.mxu0 %v1452
    %v1533 = vpop.f32.mrf.mxu0
    %v1534 = vadd.f32 0.0, %v1533
    %v1535 = vpop.f32.mrf.mxu0
    %1536 = vmatprep.mubr.f32.mxu0 0.0
    %1537 = vmatmul.mubr.f32.gmra.mxu0 %v1455
    %v1538 = vpop.f32.mrf.mxu0
    %v1539 = vadd.f32 0.0, %v1538
    %v1540 = vpop.f32.mrf.mxu0
    %1541 = vdwg.mxu0
    %1543 = vrot.lane.b32.xlu0 %v40, 32
    %v1544 = vpop.permute.xlu0 %1543
    %v1547 = vsel %vm170, %v1524, 0
    %v1550 = vsel %vm170, %v1529, 0
    %v1553 = vsel %vm170, %v1534, 0
    %v1556 = vsel %vm170, %v1539, 0
    %1558 = vmatprep.subr.mxu0 0.0
    %1559 = vmatpush1.msra.mxu0 0.0
    %1560 = vmatprep.subr.mxu0 0.0
    %1561 = vmatpush1.msra.mxu0 0.0
    %1562 = vmatprep.subr.mxu0 0.0
    %1563 = vmatpush1.msra.mxu0 0.0
    %1564 = vmatprep.subr.mxu0 0.0
    %1565 = vmatpush1.msra.mxu0 0.0
    %1566 = vmatprep.subr.mxu0 0.0
    %1567 = vmatpush1.msra.mxu0 0.0
    %1568 = vmatprep.subr.mxu0 0.0
    %1569 = vmatpush1.msra.mxu0 0.0
    %1570 = vmatprep.subr.mxu0 0.0
    %1571 = vmatpush1.msra.mxu0 0.0
    %1572 = vmatprep.subr.mxu0 0.0
    %1573 = vmatpush1.msra.mxu0 0.0
    %1574 = vmatprep.subr.mxu0 0.0
    %1575 = vmatpush1.msra.mxu0 0.0
    %1576 = vmatprep.subr.mxu0 0.0
    %1577 = vmatpush1.msra.mxu0 0.0
    %1578 = vmatprep.subr.mxu0 0.0
    %1579 = vmatpush1.msra.mxu0 0.0
    %1580 = vmatprep.subr.mxu0 0.0
    %1581 = vmatpush1.msra.mxu0 0.0
    %1582 = vmatprep.subr.mxu0 0.0
    %1583 = vmatpush1.msra.mxu0 0.0
    %1584 = vmatprep.subr.mxu0 0.0
    %1585 = vmatpush1.msra.mxu0 0.0
    %1586 = vmatprep.subr.mxu0 0.0
    %1587 = vmatpush1.msra.mxu0 0.0
    %1588 = vmatprep.subr.mxu0 0.0
    %1589 = vmatpush1.msra.mxu0 %v1544
    %1590 = vmatprep.subr.mxu0 0.0
    %1591 = vmatpush2.msra.mxu0 0.0
    %1592 = vmatprep.subr.mxu0 0.0
    %1593 = vmatpush2.msra.mxu0 0.0
    %1594 = vmatprep.subr.mxu0 0.0
    %1595 = vmatpush2.msra.mxu0 0.0
    %1596 = vmatprep.subr.mxu0 0.0
    %1597 = vmatpush2.msra.mxu0 0.0
    %1598 = vmatprep.subr.mxu0 0.0
    %1599 = vmatpush2.msra.mxu0 0.0
    %1600 = vmatprep.subr.mxu0 0.0
    %1601 = vmatpush2.msra.mxu0 0.0
    %1602 = vmatprep.subr.mxu0 0.0
    %1603 = vmatpush2.msra.mxu0 0.0
    %1604 = vmatprep.subr.mxu0 0.0
    %1605 = vmatpush2.msra.mxu0 0.0
    %1606 = vmatprep.subr.mxu0 0.0
    %1607 = vmatpush2.msra.mxu0 0.0
    %1608 = vmatprep.subr.mxu0 0.0
    %1609 = vmatpush2.msra.mxu0 0.0
    %1610 = vmatprep.subr.mxu0 0.0
    %1611 = vmatpush2.msra.mxu0 0.0
    %1612 = vmatprep.subr.mxu0 0.0
    %1613 = vmatpush2.msra.mxu0 0.0
    %1614 = vmatprep.subr.mxu0 0.0
    %1615 = vmatpush2.msra.mxu0 0.0
    %1616 = vmatprep.subr.mxu0 0.0
    %1617 = vmatpush2.msra.mxu0 0.0
    %1618 = vmatprep.subr.mxu0 0.0
    %1619 = vmatpush2.msra.mxu0 0.0
    %1620 = vmatprep.subr.mxu0 0.0
    %1621 = vmatpush2.msra.mxu0 0.0
    %1622 = vmatprep.mubr.f32.mxu0 0.0
    %1623 = vmatmul.mubr.f32.gmra.mxu0 %v1547
    %v1624 = vpop.f32.mrf.mxu0
    %v1625 = vadd.f32 0.0, %v1624
    %v1626 = vpop.f32.mrf.mxu0
    %1627 = vmatprep.mubr.f32.mxu0 0.0
    %1628 = vmatmul.mubr.f32.gmra.mxu0 %v1550
    %v1629 = vpop.f32.mrf.mxu0
    %v1630 = vadd.f32 0.0, %v1629
    %v1631 = vpop.f32.mrf.mxu0
    %1632 = vmatprep.mubr.f32.mxu0 0.0
    %1633 = vmatmul.mubr.f32.gmra.mxu0 %v1553
    %v1634 = vpop.f32.mrf.mxu0
    %v1635 = vadd.f32 0.0, %v1634
    %v1636 = vpop.f32.mrf.mxu0
    %1637 = vmatprep.mubr.f32.mxu0 0.0
    %1638 = vmatmul.mubr.f32.gmra.mxu0 %v1556
    %v1639 = vpop.f32.mrf.mxu0
    %v1640 = vadd.f32 0.0, %v1639
    %v1641 = vpop.f32.mrf.mxu0
    %1642 = vdwg.mxu0
    %v1643 = vadd.f32 %v1268, %v1625
    %v1644 = vadd.f32 %v1269, %v1630
    %v1645 = vadd.f32 %v1270, %v1635
    %v1646 = vadd.f32 %v1271, %v1640
    %v1647 = vadd.f32 %v29, %v1643
    %v1648 = vadd.f32 %v30, %v1644
    %v1649 = vadd.f32 %v31, %v1645
    %v1650 = vadd.f32 %v32, %v1646
    %v1651 = vlaneseq
    %v1652 = vshrl.u32 %v1651, 7
    %v1653 = vsub.s32 0, %v1652
    %v1654 = vrot.slane %v42, %v1653
    %1656 = vrot.lane.b32.xlu0 %v1654, 32
    %v1657 = vpop.permute.xlu0 %1656
    %v1659 = vadd.f32 %v1647, %v1657
    %v1660 = vadd.f32 %v1648, %v1657
    %v1661 = vadd.f32 %v1649, %v1657
    %v1662 = vadd.f32 %v1650, %v1657
    %v1663 = vsel %vm60, %v1659, 0.0
    %1664 = vadd.xlane.f32.xlu0 %v1663
    %v1665 = vpop.xlane.xlu0 %1664
    %v1666 = vsel %vm60, %v1660, 0.0
    %1667 = vadd.xlane.f32.xlu0 %v1666
    %v1668 = vpop.xlane.xlu0 %1667
    %v1669 = vsel %vm60, %v1661, 0.0
    %1670 = vadd.xlane.f32.xlu0 %v1669
    %v1671 = vpop.xlane.xlu0 %1670
    %v1672 = vsel %vm60, %v1662, 0.0
    %1673 = vadd.xlane.f32.xlu0 %v1672
    %v1674 = vpop.xlane.xlu0 %1673
    %v1675 = vmul.f32 %v1665, 0.03125
    %v1676 = vmul.f32 %v1668, 0.03125
    %v1677 = vmul.f32 %v1671, 0.03125
    %v1678 = vmul.f32 %v1674, 0.03125
    %v1679 = vsub.f32 %v1659, %v1675
    %v1680 = vsub.f32 %v1660, %v1676
    %v1681 = vsub.f32 %v1661, %v1677
    %v1682 = vsub.f32 %v1662, %v1678
    %v1683 = vmul.f32 %v1679, %v1679
    %v1684 = vmul.f32 %v1680, %v1680
    %v1685 = vmul.f32 %v1681, %v1681
    %v1686 = vmul.f32 %v1682, %v1682
    %v1687 = vsel %vm60, %v1683, 0.0
    %1688 = vadd.xlane.f32.xlu0 %v1687
    %v1689 = vpop.xlane.xlu0 %1688
    %v1690 = vsel %vm60, %v1684, 0.0
    %1691 = vadd.xlane.f32.xlu0 %v1690
    %v1692 = vpop.xlane.xlu0 %1691
    %v1693 = vsel %vm60, %v1685, 0.0
    %1694 = vadd.xlane.f32.xlu0 %v1693
    %v1695 = vpop.xlane.xlu0 %1694
    %v1696 = vsel %vm60, %v1686, 0.0
    %1697 = vadd.xlane.f32.xlu0 %v1696
    %v1698 = vpop.xlane.xlu0 %1697
    %v1699 = vmul.f32 %v1689, 0.032258064
    %v1700 = vmul.f32 %v1692, 0.032258064
    %v1701 = vmul.f32 %v1695, 0.032258064
    %v1702 = vmul.f32 %v1698, 0.032258064
    %v1703 = vrsqrt.pop %v1699
    %v1704 = vmul.f32 %v1699, %v1703
    %vm1705 = vcmp.eq.f32.partialorder %v1699, inf
    %v1706 = vsel %vm1705, %v1699, %v1704
    %vm1707 = vcmp.eq.f32.partialorder %v1699, 0.0
    %v1708 = vand.u32 %v1699, 2147483648
    %v1709 = vsel %vm1707, %v1708, %v1706
    %v1710 = vrsqrt.pop %v1700
    %v1711 = vmul.f32 %v1700, %v1710
    %vm1712 = vcmp.eq.f32.partialorder %v1700, inf
    %v1713 = vsel %vm1712, %v1700, %v1711
    %vm1714 = vcmp.eq.f32.partialorder %v1700, 0.0
    %v1715 = vand.u32 %v1700, 2147483648
    %v1716 = vsel %vm1714, %v1715, %v1713
    %v1717 = vrsqrt.pop %v1701
    %v1718 = vmul.f32 %v1701, %v1717
    %vm1719 = vcmp.eq.f32.partialorder %v1701, inf
    %v1720 = vsel %vm1719, %v1701, %v1718
    %vm1721 = vcmp.eq.f32.partialorder %v1701, 0.0
    %v1722 = vand.u32 %v1701, 2147483648
    %v1723 = vsel %vm1721, %v1722, %v1720
    %v1724 = vrsqrt.pop %v1702
    %v1725 = vmul.f32 %v1702, %v1724
    %vm1726 = vcmp.eq.f32.partialorder %v1702, inf
    %v1727 = vsel %vm1726, %v1702, %v1725
    %vm1728 = vcmp.eq.f32.partialorder %v1702, 0.0
    %v1729 = vand.u32 %v1702, 2147483648
    %v1730 = vsel %vm1728, %v1729, %v1727
    %v1731 = vadd.f32 %v1709, 1e-06
    %v1732 = vadd.f32 %v1716, 1e-06
    %v1733 = vadd.f32 %v1723, 1e-06
    %v1734 = vadd.f32 %v1730, 1e-06
    %v1735 = vrcp.pop %v1731
    %v1736 = vrcp.pop %v1732
    %v1737 = vrcp.pop %v1733
    %v1738 = vrcp.pop %v1734
    %v1739 = vlaneseq
    %v1740 = vshrl.u32 %v1739, 7
    %v1741 = vsub.s32 1, %v1740
    %v1742 = vrot.slane %v42, %v1741
    %1747 = vrot.lane.b32.xlu0 %v1679, 96
    %v1748 = vpop.permute.xlu0 %1747
    %1749 = vrot.lane.b32.xlu0 %v1680, 96
    %v1750 = vpop.permute.xlu0 %1749
    %1751 = vrot.lane.b32.xlu0 %v1681, 96
    %v1752 = vpop.permute.xlu0 %1751
    %1753 = vrot.lane.b32.xlu0 %v1682, 96
    %v1754 = vpop.permute.xlu0 %1753
    %v1759 = vmul.f32 %v1742, %v1748
    %v1760 = vmul.f32 %v1742, %v1750
    %v1761 = vmul.f32 %v1742, %v1752
    %v1762 = vmul.f32 %v1742, %v1754
    %v1763 = vmul.f32 %v1759, %v1735
    %v1764 = vmul.f32 %v1760, %v1736
    %v1765 = vmul.f32 %v1761, %v1737
    %v1766 = vmul.f32 %v1762, %v1738
    %v1767 = vlaneseq
    %v1768 = vshrl.u32 %v1767, 7
    %v1769 = vsub.s32 2, %v1768
    %v1770 = vrot.slane %v42, %v1769
    %v1771 = vadd.f32 %v1763, %v1770
    %v1772 = vadd.f32 %v1764, %v1770
    %v1773 = vadd.f32 %v1765, %v1770
    %v1774 = vadd.f32 %v1766, %v1770
    %v1775 = vlaneseq
    %v1776 = vshrl.u32 %v1775, 7
    %v1777 = vsub.s32 0, %v1776
    %v1778 = vrot.slane %v47, %v1777
    %1783 = vrot.lane.b32.xlu0 %v1771, 32
    %v1784 = vpop.permute.xlu0 %1783
    %1785 = vrot.lane.b32.xlu0 %v1772, 32
    %v1786 = vpop.permute.xlu0 %1785
    %1787 = vrot.lane.b32.xlu0 %v1773, 32
    %v1788 = vpop.permute.xlu0 %1787
    %1789 = vrot.lane.b32.xlu0 %v1774, 32
    %v1790 = vpop.permute.xlu0 %1789
    %v1791 = vsel %vm60, %v1784, 0
    %v1793 = vsel %vm60, %v1786, 0
    %v1795 = vsel %vm60, %v1788, 0
    %v1797 = vsel %vm60, %v1790, 0
    %1799 = vmatprep.subr.mxu0 0.0
    %1800 = vmatpush1.msra.mxu0 0.0
    %1801 = vmatprep.subr.mxu0 0.0
    %1802 = vmatpush1.msra.mxu0 0.0
    %1803 = vmatprep.subr.mxu0 0.0
    %1804 = vmatpush1.msra.mxu0 0.0
    %1805 = vmatprep.subr.mxu0 0.0
    %1806 = vmatpush1.msra.mxu0 0.0
    %1807 = vmatprep.subr.mxu0 0.0
    %1808 = vmatpush1.msra.mxu0 0.0
    %1809 = vmatprep.subr.mxu0 0.0
    %1810 = vmatpush1.msra.mxu0 0.0
    %1811 = vmatprep.subr.mxu0 0.0
    %1812 = vmatpush1.msra.mxu0 0.0
    %1813 = vmatprep.subr.mxu0 0.0
    %1814 = vmatpush1.msra.mxu0 0.0
    %1815 = vmatprep.subr.mxu0 0.0
    %1816 = vmatpush1.msra.mxu0 0.0
    %1817 = vmatprep.subr.mxu0 0.0
    %1818 = vmatpush1.msra.mxu0 0.0
    %1819 = vmatprep.subr.mxu0 0.0
    %1820 = vmatpush1.msra.mxu0 0.0
    %1821 = vmatprep.subr.mxu0 0.0
    %1822 = vmatpush1.msra.mxu0 0.0
    %1823 = vmatprep.subr.mxu0 0.0
    %1824 = vmatpush1.msra.mxu0 %v46
    %1825 = vmatprep.subr.mxu0 0.0
    %1826 = vmatpush1.msra.mxu0 %v45
    %1827 = vmatprep.subr.mxu0 0.0
    %1828 = vmatpush1.msra.mxu0 %v44
    %1829 = vmatprep.subr.mxu0 0.0
    %1830 = vmatpush1.msra.mxu0 %v43
    %1831 = vmatprep.subr.mxu0 0.0
    %1832 = vmatpush2.msra.mxu0 0.0
    %1833 = vmatprep.subr.mxu0 0.0
    %1834 = vmatpush2.msra.mxu0 0.0
    %1835 = vmatprep.subr.mxu0 0.0
    %1836 = vmatpush2.msra.mxu0 0.0
    %1837 = vmatprep.subr.mxu0 0.0
    %1838 = vmatpush2.msra.mxu0 0.0
    %1839 = vmatprep.subr.mxu0 0.0
    %1840 = vmatpush2.msra.mxu0 0.0
    %1841 = vmatprep.subr.mxu0 0.0
    %1842 = vmatpush2.msra.mxu0 0.0
    %1843 = vmatprep.subr.mxu0 0.0
    %1844 = vmatpush2.msra.mxu0 0.0
    %1845 = vmatprep.subr.mxu0 0.0
    %1846 = vmatpush2.msra.mxu0 0.0
    %1847 = vmatprep.subr.mxu0 0.0
    %1848 = vmatpush2.msra.mxu0 0.0
    %1849 = vmatprep.subr.mxu0 0.0
    %1850 = vmatpush2.msra.mxu0 0.0
    %1851 = vmatprep.subr.mxu0 0.0
    %1852 = vmatpush2.msra.mxu0 0.0
    %1853 = vmatprep.subr.mxu0 0.0
    %1854 = vmatpush2.msra.mxu0 0.0
    %1855 = vmatprep.subr.mxu0 0.0
    %1856 = vmatpush2.msra.mxu0 0.0
    %1857 = vmatprep.subr.mxu0 0.0
    %1858 = vmatpush2.msra.mxu0 0.0
    %1859 = vmatprep.subr.mxu0 0.0
    %1860 = vmatpush2.msra.mxu0 0.0
    %1861 = vmatprep.subr.mxu0 0.0
    %1862 = vmatpush2.msra.mxu0 0.0
    %1863 = vmatprep.mubr.f32.mxu0 0.0
    %1864 = vmatmul.mubr.f32.gmra.mxu0 %v1791
    %v1865 = vpop.f32.mrf.mxu0
    %v1866 = vadd.f32 %v1778, %v1865
    %v1867 = vpop.f32.mrf.mxu0
    %1868 = vmatprep.mubr.f32.mxu0 0.0
    %1869 = vmatmul.mubr.f32.gmra.mxu0 %v1793
    %v1870 = vpop.f32.mrf.mxu0
    %v1871 = vadd.f32 %v1778, %v1870
    %v1872 = vpop.f32.mrf.mxu0
    %1873 = vmatprep.mubr.f32.mxu0 0.0
    %1874 = vmatmul.mubr.f32.gmra.mxu0 %v1795
    %v1875 = vpop.f32.mrf.mxu0
    %v1876 = vadd.f32 %v1778, %v1875
    %v1877 = vpop.f32.mrf.mxu0
    %1878 = vmatprep.mubr.f32.mxu0 0.0
    %1879 = vmatmul.mubr.f32.gmra.mxu0 %v1797
    %v1880 = vpop.f32.mrf.mxu0
    %v1881 = vadd.f32 %v1778, %v1880
    %v1882 = vpop.f32.mrf.mxu0
    %1883 = vdwg.mxu0
    %v1884 = vmax.f32 %v1866, 0.0
    %v1885 = vmax.f32 %v1871, 0.0
    %v1886 = vmax.f32 %v1876, 0.0
    %v1887 = vmax.f32 %v1881, 0.0
    %v1888 = vlaneseq
    %v1889 = vshrl.u32 %v1888, 7
    %v1890 = vsub.s32 3, %v1889
    %v1891 = vrot.slane %v42, %v1890
    %1893 = vrot.lane.b32.xlu0 %v1891, 32
    %v1894 = vpop.permute.xlu0 %1893
    %vm1896 = vcmask 523264
    %v1898 = vsel %vm1896, %v1884, 0
    %v1901 = vsel %vm1896, %v1885, 0
    %v1904 = vsel %vm1896, %v1886, 0
    %v1907 = vsel %vm1896, %v1887, 0
    %1909 = vmatprep.subr.mxu0 0.0
    %1910 = vmatpush1.msra.mxu0 0.0
    %1911 = vmatprep.subr.mxu0 0.0
    %1912 = vmatpush1.msra.mxu0 0.0
    %1913 = vmatprep.subr.mxu0 0.0
    %1914 = vmatpush1.msra.mxu0 0.0
    %1915 = vmatprep.subr.mxu0 0.0
    %1916 = vmatpush1.msra.mxu0 0.0
    %1917 = vmatprep.subr.mxu0 0.0
    %1918 = vmatpush1.msra.mxu0 0.0
    %1919 = vmatprep.subr.mxu0 0.0
    %1920 = vmatpush1.msra.mxu0 0.0
    %1921 = vmatprep.subr.mxu0 0.0
    %1922 = vmatpush1.msra.mxu0 0.0
    %1923 = vmatprep.subr.mxu0 0.0
    %1924 = vmatpush1.msra.mxu0 0.0
    %1925 = vmatprep.subr.mxu0 0.0
    %1926 = vmatpush1.msra.mxu0 %v55
    %1927 = vmatprep.subr.mxu0 0.0
    %1928 = vmatpush1.msra.mxu0 %v54
    %1929 = vmatprep.subr.mxu0 0.0
    %1930 = vmatpush1.msra.mxu0 %v53
    %1931 = vmatprep.subr.mxu0 0.0
    %1932 = vmatpush1.msra.mxu0 %v52
    %1933 = vmatprep.subr.mxu0 0.0
    %1934 = vmatpush1.msra.mxu0 %v51
    %1935 = vmatprep.subr.mxu0 0.0
    %1936 = vmatpush1.msra.mxu0 %v50
    %1937 = vmatprep.subr.mxu0 0.0
    %1938 = vmatpush1.msra.mxu0 %v49
    %1939 = vmatprep.subr.mxu0 0.0
    %1940 = vmatpush1.msra.mxu0 %v48
    %1941 = vmatprep.subr.mxu0 0.0
    %1942 = vmatpush2.msra.mxu0 0.0
    %1943 = vmatprep.subr.mxu0 0.0
    %1944 = vmatpush2.msra.mxu0 0.0
    %1945 = vmatprep.subr.mxu0 0.0
    %1946 = vmatpush2.msra.mxu0 0.0
    %1947 = vmatprep.subr.mxu0 0.0
    %1948 = vmatpush2.msra.mxu0 0.0
    %1949 = vmatprep.subr.mxu0 0.0
    %1950 = vmatpush2.msra.mxu0 0.0
    %1951 = vmatprep.subr.mxu0 0.0
    %1952 = vmatpush2.msra.mxu0 0.0
    %1953 = vmatprep.subr.mxu0 0.0
    %1954 = vmatpush2.msra.mxu0 0.0
    %1955 = vmatprep.subr.mxu0 0.0
    %1956 = vmatpush2.msra.mxu0 0.0
    %1957 = vmatprep.subr.mxu0 0.0
    %1958 = vmatpush2.msra.mxu0 0.0
    %1959 = vmatprep.subr.mxu0 0.0
    %1960 = vmatpush2.msra.mxu0 0.0
    %1961 = vmatprep.subr.mxu0 0.0
    %1962 = vmatpush2.msra.mxu0 0.0
    %1963 = vmatprep.subr.mxu0 0.0
    %1964 = vmatpush2.msra.mxu0 0.0
    %1965 = vmatprep.subr.mxu0 0.0
    %1966 = vmatpush2.msra.mxu0 0.0
    %1967 = vmatprep.subr.mxu0 0.0
    %1968 = vmatpush2.msra.mxu0 0.0
    %1969 = vmatprep.subr.mxu0 0.0
    %1970 = vmatpush2.msra.mxu0 0.0
    %1971 = vmatprep.subr.mxu0 0.0
    %1972 = vmatpush2.msra.mxu0 0.0
    %1973 = vmatprep.mubr.f32.mxu0 0.0
    %1974 = vmatmul.mubr.f32.gmra.mxu0 %v1898
    %v1975 = vpop.f32.mrf.mxu0
    %v1976 = vadd.f32 %v1894, %v1975
    %v1977 = vpop.f32.mrf.mxu0
    %1978 = vmatprep.mubr.f32.mxu0 0.0
    %1979 = vmatmul.mubr.f32.gmra.mxu0 %v1901
    %v1980 = vpop.f32.mrf.mxu0
    %v1981 = vadd.f32 %v1894, %v1980
    %v1982 = vpop.f32.mrf.mxu0
    %1983 = vmatprep.mubr.f32.mxu0 0.0
    %1984 = vmatmul.mubr.f32.gmra.mxu0 %v1904
    %v1985 = vpop.f32.mrf.mxu0
    %v1986 = vadd.f32 %v1894, %v1985
    %v1987 = vpop.f32.mrf.mxu0
    %1988 = vmatprep.mubr.f32.mxu0 0.0
    %1989 = vmatmul.mubr.f32.gmra.mxu0 %v1907
    %v1990 = vpop.f32.mrf.mxu0
    %v1991 = vadd.f32 %v1894, %v1990
    %v1992 = vpop.f32.mrf.mxu0
    %1993 = vdwg.mxu0
    %1998 = vrot.lane.b32.xlu0 %v1976, 96
    %v1999 = vpop.permute.xlu0 %1998
    %2000 = vrot.lane.b32.xlu0 %v1981, 96
    %v2001 = vpop.permute.xlu0 %2000
    %2002 = vrot.lane.b32.xlu0 %v1986, 96
    %v2003 = vpop.permute.xlu0 %2002
    %2004 = vrot.lane.b32.xlu0 %v1991, 96
    %v2005 = vpop.permute.xlu0 %2004
    %v2010 = vadd.f32 %v1771, %v1999
    %v2011 = vadd.f32 %v1772, %v2001
    %v2012 = vadd.f32 %v1773, %v2003
    %v2013 = vadd.f32 %v1774, %v2005
    %2018 = vrot.lane.b32.xlu0 %v2010, 32
    %v2019 = vpop.permute.xlu0 %2018
    %2020 = vrot.lane.b32.xlu0 %v2011, 32
    %v2021 = vpop.permute.xlu0 %2020
    %2022 = vrot.lane.b32.xlu0 %v2012, 32
    %v2023 = vpop.permute.xlu0 %2022
    %2024 = vrot.lane.b32.xlu0 %v2013, 32
    %v2025 = vpop.permute.xlu0 %2024
    %v2030 = vsel %vm60, %v2019, 0.0
    %2031 = vadd.xlane.f32.xlu0 %v2030
    %v2032 = vpop.xlane.xlu0 %2031
    %v2033 = vsel %vm60, %v2021, 0.0
    %2034 = vadd.xlane.f32.xlu0 %v2033
    %v2035 = vpop.xlane.xlu0 %2034
    %v2036 = vsel %vm60, %v2023, 0.0
    %2037 = vadd.xlane.f32.xlu0 %v2036
    %v2038 = vpop.xlane.xlu0 %2037
    %v2039 = vsel %vm60, %v2025, 0.0
    %2040 = vadd.xlane.f32.xlu0 %v2039
    %v2041 = vpop.xlane.xlu0 %2040
    %v2042 = vmul.f32 %v2032, 0.03125
    %v2043 = vmul.f32 %v2035, 0.03125
    %v2044 = vmul.f32 %v2038, 0.03125
    %v2045 = vmul.f32 %v2041, 0.03125
    %v2046 = vsub.f32 %v2010, %v2042
    %v2047 = vsub.f32 %v2011, %v2043
    %v2048 = vsub.f32 %v2012, %v2044
    %v2049 = vsub.f32 %v2013, %v2045
    %v2050 = vmul.f32 %v2046, %v2046
    %v2051 = vmul.f32 %v2047, %v2047
    %v2052 = vmul.f32 %v2048, %v2048
    %v2053 = vmul.f32 %v2049, %v2049
    %2058 = vrot.lane.b32.xlu0 %v2050, 32
    %v2059 = vpop.permute.xlu0 %2058
    %2060 = vrot.lane.b32.xlu0 %v2051, 32
    %v2061 = vpop.permute.xlu0 %2060
    %2062 = vrot.lane.b32.xlu0 %v2052, 32
    %v2063 = vpop.permute.xlu0 %2062
    %2064 = vrot.lane.b32.xlu0 %v2053, 32
    %v2065 = vpop.permute.xlu0 %2064
    %v2070 = vsel %vm60, %v2059, 0.0
    %2071 = vadd.xlane.f32.xlu0 %v2070
    %v2072 = vpop.xlane.xlu0 %2071
    %v2073 = vsel %vm60, %v2061, 0.0
    %2074 = vadd.xlane.f32.xlu0 %v2073
    %v2075 = vpop.xlane.xlu0 %2074
    %v2076 = vsel %vm60, %v2063, 0.0
    %2077 = vadd.xlane.f32.xlu0 %v2076
    %v2078 = vpop.xlane.xlu0 %2077
    %v2079 = vsel %vm60, %v2065, 0.0
    %2080 = vadd.xlane.f32.xlu0 %v2079
    %v2081 = vpop.xlane.xlu0 %2080
    %v2082 = vmul.f32 %v2072, 0.032258064
    %v2083 = vmul.f32 %v2075, 0.032258064
    %v2084 = vmul.f32 %v2078, 0.032258064
    %v2085 = vmul.f32 %v2081, 0.032258064
    %v2086 = vrsqrt.pop %v2082
    %v2087 = vmul.f32 %v2082, %v2086
    %vm2088 = vcmp.eq.f32.partialorder %v2082, inf
    %v2089 = vsel %vm2088, %v2082, %v2087
    %vm2090 = vcmp.eq.f32.partialorder %v2082, 0.0
    %v2091 = vand.u32 %v2082, 2147483648
    %v2092 = vsel %vm2090, %v2091, %v2089
    %v2093 = vrsqrt.pop %v2083
    %v2094 = vmul.f32 %v2083, %v2093
    %vm2095 = vcmp.eq.f32.partialorder %v2083, inf
    %v2096 = vsel %vm2095, %v2083, %v2094
    %vm2097 = vcmp.eq.f32.partialorder %v2083, 0.0
    %v2098 = vand.u32 %v2083, 2147483648
    %v2099 = vsel %vm2097, %v2098, %v2096
    %v2100 = vrsqrt.pop %v2084
    %v2101 = vmul.f32 %v2084, %v2100
    %vm2102 = vcmp.eq.f32.partialorder %v2084, inf
    %v2103 = vsel %vm2102, %v2084, %v2101
    %vm2104 = vcmp.eq.f32.partialorder %v2084, 0.0
    %v2105 = vand.u32 %v2084, 2147483648
    %v2106 = vsel %vm2104, %v2105, %v2103
    %v2107 = vrsqrt.pop %v2085
    %v2108 = vmul.f32 %v2085, %v2107
    %vm2109 = vcmp.eq.f32.partialorder %v2085, inf
    %v2110 = vsel %vm2109, %v2085, %v2108
    %vm2111 = vcmp.eq.f32.partialorder %v2085, 0.0
    %v2112 = vand.u32 %v2085, 2147483648
    %v2113 = vsel %vm2111, %v2112, %v2110
    %v2114 = vadd.f32 %v2092, 1e-06
    %v2115 = vadd.f32 %v2099, 1e-06
    %v2116 = vadd.f32 %v2106, 1e-06
    %v2117 = vadd.f32 %v2113, 1e-06
    %v2118 = vrcp.pop %v2114
    %v2119 = vrcp.pop %v2115
    %v2120 = vrcp.pop %v2116
    %v2121 = vrcp.pop %v2117
    %v2122 = vlaneseq
    %v2123 = vshrl.u32 %v2122, 7
    %v2124 = vsub.s32 4, %v2123
    %v2125 = vrot.slane %v42, %v2124
    %v2126 = vmul.f32 %v2125, %v2046
    %v2127 = vmul.f32 %v2125, %v2047
    %v2128 = vmul.f32 %v2125, %v2048
    %v2129 = vmul.f32 %v2125, %v2049
    %v2130 = vmul.f32 %v2126, %v2118
    %v2131 = vmul.f32 %v2127, %v2119
    %v2132 = vmul.f32 %v2128, %v2120
    %v2133 = vmul.f32 %v2129, %v2121
    %v2134 = vlaneseq
    %v2135 = vshrl.u32 %v2134, 7
    %v2136 = vsub.s32 5, %v2135
    %v2137 = vrot.slane %v42, %v2136
    %v2138 = vadd.f32 %v2130, %v2137
    %v2139 = vadd.f32 %v2131, %v2137
    %v2140 = vadd.f32 %v2132, %v2137
    %v2141 = vadd.f32 %v2133, %v2137
    %2146 = vrot.lane.b32.xlu0 %v2138, 32
    %v2147 = vpop.permute.xlu0 %2146
    %2148 = vrot.lane.b32.xlu0 %v2139, 32
    %v2149 = vpop.permute.xlu0 %2148
    %2150 = vrot.lane.b32.xlu0 %v2140, 32
    %v2151 = vpop.permute.xlu0 %2150
    %2152 = vrot.lane.b32.xlu0 %v2141, 32
    %v2153 = vpop.permute.xlu0 %2152
    %2158 = vst.msk [vmem:[#allocation5] sm:$0xff] %vm60, %v2147
    %2159 = vst.msk [vmem:[#allocation5 + $0x8] sm:$0xff] %vm60, %v2149
    %2160 = vst.msk [vmem:[#allocation5 + $0x10] sm:$0xff] %vm60, %v2151
    %2161 = vst.msk [vmem:[#allocation5 + $0x18] sm:$0xff] %vm60, %v2153
    // Predicated region
    $region18: #{encoder_forward.1} parent=1 // pred_check
      _
    $region19: #{encoder_forward.1} parent=1 // pred_check_branch
      %2163 = sbr.rel (0) target = $region21
    $region20: #{encoder_forward.1} parent=1 // pred_region
      %s2165 = ssub.s32 512, 512
      %2166 = vsyncadd [#allocation4], %s2165
      %s2167 = sshll.u32 [#allocation5], 4
      %s2168 = int_to_ptr.vmem [resolvable:$true] %s2167
      %2173 = dma.vmem_to_hbm [thread:$0]  %s2168, 512, %s3, [#allocation4], 128, 128, 8
    $region21: #{encoder_forward.1} parent=1 // pred_fallthru
      _
    // Predicated region
    $region22: #{encoder_forward.1} parent=1 // pred_check
      _
    $region23: #{encoder_forward.1} parent=1 // pred_check_branch
      %2175 = sbr.rel (0) target = $region25
    $region24: #{encoder_forward.1} parent=1 // pred_region
      %2176 = dma.done [#allocation4], 512
    $region25: #{encoder_forward.1} parent=1 // pred_fallthru
      _
    %2177 = vsyncpa [#allocation3], 1
    %2178 = vsyncpa [#allocation4], 1

</llo_original>
